<compile_context>
chip_gen: v6e
topology: v6e:2x2x1
jax: 0.10.0
libtpu: 0.0.40
codegen_flags: <defaults>
</compile_context>

<pallas_src>
import math
from functools import partial

import jax
import jax.numpy as jnp
from jax.experimental import pallas as pl
from jax.experimental.pallas import tpu as pltpu

# Kinematic constants (from Motion_Model.__init__)
LF = 0.15875
LR = 0.17145
LWB = LF + LR
TIME_STEP1 = 0.01
TIME_STEP2 = 0.01            # == TIME_STEP1, so dv / dtheta are shared below
PI = math.pi
TWO_PI = 2.0 * math.pi
INV_TWO_PI = 1.0 / TWO_PI
DT_OVER_LWB = TIME_STEP1 / LWB   # fold the /lwb divide into a constant

_LANE = 128


def _wrap_angle(x):
    # torch.remainder(x + pi, 2*pi) - pi, written as a floor-based mod with a
    # compile-time reciprocal so no runtime divide is emitted.  Can differ from
    # torch.remainder by one ULP exactly at the 2*pi boundary (+pi vs -pi).
    shifted = x + PI
    return shifted - TWO_PI * jnp.floor(shifted * INV_TWO_PI) - PI


def motion_model_kernel(pose_ref, vel_ref, steer_ref, pose2_ref, th1_ref):
    # pose_ref: (3, TN); vel_ref / steer_ref / th1_ref: (1, TN); pose2_ref: (3, TN)
    px = pose_ref[0:1, :]
    py = pose_ref[1:2, :]
    pth = pose_ref[2:3, :]
    v = vel_ref[...]
    steer = steer_ref[...]

    # tan(steer) as sin/cos with an exact divide: pl.reciprocal(approx=True)
    # has ~2^-12 rel error which, propagated through dtheta, lands right at
    # the 1e-5 tolerance -- so we keep the exact path.
    tan_steer = jnp.sin(steer) / jnp.cos(steer)

    # Per-element scalars shared by both propagation steps (dt1 == dt2).
    dv = v * TIME_STEP1                    # distance travelled per step
    dtheta = tan_steer * v * DT_OVER_LWB   # heading change per step

    # First propagation step (dt = 0.01 s).
    pose1_x = px + jnp.cos(pth) * dv
    pose1_y = py + jnp.sin(pth) * dv
    pose1_theta = _wrap_angle(pth + dtheta)

    # Second propagation step (dt = 0.01 s); direct row stores into the
    # (3, TN) output block -- no concatenate / epilogue shuffles.
    pose2_ref[0:1, :] = pose1_x + jnp.cos(pose1_theta) * dv
    pose2_ref[1:2, :] = pose1_y + jnp.sin(pose1_theta) * dv
    pose2_ref[2:3, :] = _wrap_angle(pose1_theta + dtheta)
    th1_ref[...] = pose1_theta


@partial(jax.jit, static_argnames=("lanes_per_block", "core_parallel"))
def motion_model(pose, velocity, steer, *, lanes_per_block=128 * 1024,
                 core_parallel=False):
    """pose: (3, N) f32, velocity: (N,) f32, steer: (N,) f32.

    Returns (pose2 (3, N), pose1_theta (N,)), matching the PyTorch module's
    (torch.stack([pose2_x, pose2_y, pose2_theta]), pose1_theta).

    lanes_per_block: lanes (elements) processed per grid step.  The default
    (131072) keeps the double-buffered working set at ~9 MiB, under the
    default scoped-VMEM limit on every TPU generation; raise
    vmem_limit_bytes in CompilerParams before going much larger (v5e default
    16 MiB, v7x physical 64 MiB).
    core_parallel: on v7x, set True to shard the grid axis across both
    TensorCores (plain "parallel" does not split across cores).
    """
    pose = jnp.asarray(pose, jnp.float32)
    # (N,) -> (1, N) is a metadata-only reshape (free); keeps all refs 2-D.
    velocity = jnp.asarray(velocity, jnp.float32).reshape(1, -1)
    steer = jnp.asarray(steer, jnp.float32).reshape(1, -1)
    n = pose.shape[1]

    if n <= lanes_per_block:
        # Single block equal to the full array dims (no 128-alignment needed,
        # no padding, no wasted traffic for small/medium N).
        tn = n
        grid = (1,)
    else:
        # Wide lane blocks (multiple of 128); the ragged last block is handled
        # by Pallas edge masking, so no host-side padding of N is required.
        tn = max(_LANE, (lanes_per_block // _LANE) * _LANE)
        grid = (pl.cdiv(n, tn),)

    pose_spec = pl.BlockSpec((3, tn), lambda i: (0, i))
    vec_spec = pl.BlockSpec((1, tn), lambda i: (0, i))

    semantics = (pltpu.CORE_PARALLEL,) if core_parallel else ("parallel",)

    pose2, th1 = pl.pallas_call(
        motion_model_kernel,
        grid=grid,
        in_specs=[pose_spec, vec_spec, vec_spec],
        out_specs=(pose_spec, vec_spec),
        out_shape=(
            jax.ShapeDtypeStruct((3, n), jnp.float32),
            jax.ShapeDtypeStruct((1, n), jnp.float32),
        ),
        compiler_params=pltpu.CompilerParams(
            dimension_semantics=semantics,
        ),
    )(pose, velocity, steer)

    # pose2 already has the stacked (3, N) layout -- no stack/slice copies.
    return pose2, th1.reshape(-1)


def motion_model_ref(pose, velocity, steer):
    """Pure-JAX reference mirroring the PyTorch forward exactly."""
    pose1_x = pose[0] + jnp.cos(pose[2]) * velocity * TIME_STEP1
    pose1_y = pose[1] + jnp.sin(pose[2]) * velocity * TIME_STEP1
    pose1_theta = jnp.mod(
        pose[2] + jnp.tan(steer) * TIME_STEP1 * velocity / LWB + PI, TWO_PI
    ) - PI
    pose2_x = pose1_x + jnp.cos(pose1_theta) * velocity * TIME_STEP2
    pose2_y = pose1_y + jnp.sin(pose1_theta) * velocity * TIME_STEP2
    pose2_theta = jnp.mod(
        pose1_theta + jnp.tan(steer) * TIME_STEP2 * velocity / LWB + PI, TWO_PI
    ) - PI
    return jnp.stack([pose2_x, pose2_y, pose2_theta]), pose1_theta


if __name__ == "__main__":
    # N not a multiple of 128: exercises both the single-block full-array path
    # and (with a small block) the multi-tile pipelined path with a ragged
    # (masked) last block.  Production default is lanes_per_block = 128k.
    N = 2200
    key = jax.random.PRNGKey(0)
    k1, k2, k3 = jax.random.split(key, 3)

    pose = jax.random.uniform(k1, (3, N), jnp.float32, minval=-3.0, maxval=3.0)
    velocity = jax.random.uniform(k2, (N,), jnp.float32, minval=0.0, maxval=5.0)
    steer = jax.random.uniform(
        k3, (N,), jnp.float32, minval=-0.4189, maxval=0.4189
    )

    pose2_expected, theta1_expected = motion_model_ref(pose, velocity, steer)

    # 1) Single-block path (block == full array dims).
    pose2, theta1 = motion_model(pose, velocity, steer)
    jax.block_until_ready((pose2, theta1))
    assert jnp.allclose(pose2, pose2_expected, atol=1e-5, rtol=1e-5)
    assert jnp.allclose(theta1, theta1_expected, atol=1e-5, rtol=1e-5)

    # 2) Multi-block path with a ragged last tile (2200 = 4*512 + 152).
    pose2_t, theta1_t = motion_model(pose, velocity, steer, lanes_per_block=512)
    jax.block_until_ready((pose2_t, theta1_t))
    assert jnp.allclose(pose2_t, pose2_expected, atol=1e-5, rtol=1e-5)
    assert jnp.allclose(theta1_t, theta1_expected, atol=1e-5, rtol=1e-5)

    print("KERNEL_OK")
</pallas_src>

<mosaic_0001>
module attributes {stable_mosaic.version = 11 : i64} {
  func.func @motion_model_kernel(%arg0: i32, %arg1: memref<3x2200xf32, #tpu.memory_space<vmem>>, %arg2: memref<1x2200xf32, #tpu.memory_space<vmem>>, %arg3: memref<1x2200xf32, #tpu.memory_space<vmem>>, %arg4: memref<3x2200xf32, #tpu.memory_space<vmem>>, %arg5: memref<1x2200xf32, #tpu.memory_space<vmem>>) attributes {dimension_semantics = [#tpu.dimension_semantics<parallel>], iteration_bounds = array<i64: 1>, scalar_prefetch = 0 : i64, scratch_operands = 0 : i64, tpu.core_type = #tpu.core_type<tc>, window_params = [{transform_indices = @transform_0, window_bounds = array<i64: 3, 2200>}, {transform_indices = @transform_1, window_bounds = array<i64: 1, 2200>}, {transform_indices = @transform_2, window_bounds = array<i64: 1, 2200>}, {transform_indices = @transform_3, window_bounds = array<i64: 3, 2200>}, {transform_indices = @transform_4, window_bounds = array<i64: 1, 2200>}]} {
    %c0 = arith.constant 0 : index
    %c0_0 = arith.constant 0 : index
    %0 = vector.load %arg1[%c0, %c0_0] : memref<3x2200xf32, #tpu.memory_space<vmem>>, vector<1x2200xf32>
    %c1 = arith.constant 1 : index
    %c0_1 = arith.constant 0 : index
    %1 = vector.load %arg1[%c1, %c0_1] : memref<3x2200xf32, #tpu.memory_space<vmem>>, vector<1x2200xf32>
    %c2 = arith.constant 2 : index
    %c0_2 = arith.constant 0 : index
    %2 = vector.load %arg1[%c2, %c0_2] : memref<3x2200xf32, #tpu.memory_space<vmem>>, vector<1x2200xf32>
    %c0_3 = arith.constant 0 : index
    %c0_4 = arith.constant 0 : index
    %3 = vector.load %arg2[%c0_3, %c0_4] : memref<1x2200xf32, #tpu.memory_space<vmem>>, vector<1x2200xf32>
    %c0_5 = arith.constant 0 : index
    %c0_6 = arith.constant 0 : index
    %4 = vector.load %arg3[%c0_5, %c0_6] : memref<1x2200xf32, #tpu.memory_space<vmem>>, vector<1x2200xf32>
    %5 = math.sin %4 : vector<1x2200xf32>
    %6 = math.cos %4 : vector<1x2200xf32>
    %7 = arith.divf %5, %6 : vector<1x2200xf32>
    %cst = arith.constant 0.00999999977 : f32
    %8 = vector.broadcast %cst : f32 to vector<1x2200xf32>
    %9 = arith.mulf %3, %8 : vector<1x2200xf32>
    %10 = arith.mulf %7, %3 : vector<1x2200xf32>
    %cst_7 = arith.constant 0.0302846767 : f32
    %11 = vector.broadcast %cst_7 : f32 to vector<1x2200xf32>
    %12 = arith.mulf %10, %11 : vector<1x2200xf32>
    %13 = math.cos %2 : vector<1x2200xf32>
    %14 = arith.mulf %13, %9 : vector<1x2200xf32>
    %15 = arith.addf %0, %14 : vector<1x2200xf32>
    %16 = math.sin %2 : vector<1x2200xf32>
    %17 = arith.mulf %16, %9 : vector<1x2200xf32>
    %18 = arith.addf %1, %17 : vector<1x2200xf32>
    %19 = arith.addf %2, %12 : vector<1x2200xf32>
    %cst_8 = arith.constant 3.14159274 : f32
    %20 = vector.broadcast %cst_8 : f32 to vector<1x2200xf32>
    %21 = arith.addf %19, %20 : vector<1x2200xf32>
    %cst_9 = arith.constant 0.159154937 : f32
    %22 = vector.broadcast %cst_9 : f32 to vector<1x2200xf32>
    %23 = arith.mulf %21, %22 : vector<1x2200xf32>
    %24 = math.floor %23 : vector<1x2200xf32>
    %cst_10 = arith.constant 6.28318548 : f32
    %25 = vector.broadcast %cst_10 : f32 to vector<1x2200xf32>
    %26 = arith.mulf %25, %24 : vector<1x2200xf32>
    %27 = arith.subf %21, %26 : vector<1x2200xf32>
    %cst_11 = arith.constant 3.14159274 : f32
    %28 = vector.broadcast %cst_11 : f32 to vector<1x2200xf32>
    %29 = arith.subf %27, %28 : vector<1x2200xf32>
    %30 = math.cos %29 : vector<1x2200xf32>
    %31 = arith.mulf %30, %9 : vector<1x2200xf32>
    %32 = arith.addf %15, %31 : vector<1x2200xf32>
    %c0_12 = arith.constant 0 : index
    %c0_13 = arith.constant 0 : index
    %33 = vector.load %arg4[%c0_12, %c0_13] : memref<3x2200xf32, #tpu.memory_space<vmem>>, vector<1x2200xf32>
    tpu.vector_store %arg4[%c0_12, %c0_13], %32 {strides = array<i32>} : memref<3x2200xf32, #tpu.memory_space<vmem>>, vector<1x2200xf32>,
    %34 = math.sin %29 : vector<1x2200xf32>
    %35 = arith.mulf %34, %9 : vector<1x2200xf32>
    %36 = arith.addf %18, %35 : vector<1x2200xf32>
    %c1_14 = arith.constant 1 : index
    %c0_15 = arith.constant 0 : index
    %37 = vector.load %arg4[%c1_14, %c0_15] : memref<3x2200xf32, #tpu.memory_space<vmem>>, vector<1x2200xf32>
    tpu.vector_store %arg4[%c1_14, %c0_15], %36 {strides = array<i32>} : memref<3x2200xf32, #tpu.memory_space<vmem>>, vector<1x2200xf32>,
    %38 = arith.addf %29, %12 : vector<1x2200xf32>
    %cst_16 = arith.constant 3.14159274 : f32
    %39 = vector.broadcast %cst_16 : f32 to vector<1x2200xf32>
    %40 = arith.addf %38, %39 : vector<1x2200xf32>
    %cst_17 = arith.constant 0.159154937 : f32
    %41 = vector.broadcast %cst_17 : f32 to vector<1x2200xf32>
    %42 = arith.mulf %40, %41 : vector<1x2200xf32>
    %43 = math.floor %42 : vector<1x2200xf32>
    %cst_18 = arith.constant 6.28318548 : f32
    %44 = vector.broadcast %cst_18 : f32 to vector<1x2200xf32>
    %45 = arith.mulf %44, %43 : vector<1x2200xf32>
    %46 = arith.subf %40, %45 : vector<1x2200xf32>
    %cst_19 = arith.constant 3.14159274 : f32
    %47 = vector.broadcast %cst_19 : f32 to vector<1x2200xf32>
    %48 = arith.subf %46, %47 : vector<1x2200xf32>
    %c2_20 = arith.constant 2 : index
    %c0_21 = arith.constant 0 : index
    %49 = vector.load %arg4[%c2_20, %c0_21] : memref<3x2200xf32, #tpu.memory_space<vmem>>, vector<1x2200xf32>
    tpu.vector_store %arg4[%c2_20, %c0_21], %48 {strides = array<i32>} : memref<3x2200xf32, #tpu.memory_space<vmem>>, vector<1x2200xf32>,
    %c0_22 = arith.constant 0 : index
    %c0_23 = arith.constant 0 : index
    %50 = vector.load %arg5[%c0_22, %c0_23] : memref<1x2200xf32, #tpu.memory_space<vmem>>, vector<1x2200xf32>
    tpu.vector_store %arg5[%c0_22, %c0_23], %29 {strides = array<i32>} : memref<1x2200xf32, #tpu.memory_space<vmem>>, vector<1x2200xf32>,
    return
  }
  func.func @transform_0(%arg0: i32) -> (i32, i32) {
    %c0_i32 = arith.constant 0 : i32
    %c0_i32_0 = arith.constant 0 : i32
    return %c0_i32, %arg0 : i32, i32
  }
  func.func @transform_1(%arg0: i32) -> (i32, i32) {
    %c0_i32 = arith.constant 0 : i32
    %c0_i32_0 = arith.constant 0 : i32
    return %c0_i32, %arg0 : i32, i32
  }
  func.func @transform_2(%arg0: i32) -> (i32, i32) {
    %c0_i32 = arith.constant 0 : i32
    %c0_i32_0 = arith.constant 0 : i32
    return %c0_i32, %arg0 : i32, i32
  }
  func.func @transform_3(%arg0: i32) -> (i32, i32) {
    %c0_i32 = arith.constant 0 : i32
    %c0_i32_0 = arith.constant 0 : i32
    return %c0_i32, %arg0 : i32, i32
  }
  func.func @transform_4(%arg0: i32) -> (i32, i32) {
    %c0_i32 = arith.constant 0 : i32
    %c0_i32_0 = arith.constant 0 : i32
    return %c0_i32, %arg0 : i32, i32
  }
}

</mosaic_0001>

<llo_original>
// kernel: motion_model.1
$region0: #{motion_model.1}
  #allocation0 [shape = 'u32[]', space=smem, size = 0x4, offset = 0x4, fixed_abs, tag = 'smem constant byte address 0x4 - core index']
  #allocation1 [shape = 'u32[144,128]{1,0:T(1,128)}', space=vmem, size = 0x12000, scoped, tag = 'internal scratch']
  %s0 = inlined_call_operand.vmem [shape: f32[3,2200], index: 0, kind: input, shape index: {}]
  %s1 = inlined_call_operand.vmem [shape: f32[1,2200], index: 1, kind: input, shape index: {}]
  %s2 = inlined_call_operand.vmem [shape: f32[1,2200], index: 2, kind: input, shape index: {}]
  %s3 = inlined_call_operand.hbm [shape: f32[3,2200], index: 3, kind: output, shape index: {0}]
  %s4 = inlined_call_operand.vmem [shape: f32[1,2200], index: 4, kind: output, shape index: {1}]
  %5 = xla_tuple %s3, %s4
  %s6 = sld [smem:[#allocation0]]
  $region30: #{motion_model.1} parent=0
    _
  %s8 = ssub.s32 1, %s6
  %s9 = scalar_select 0, %s8, %s6
  $region1: #{motion_model.1} parent=0
    #allocation2 [shape = 'u8[36864]{0}', space=vmem, size = 0x9000, scoped, tag = 'output window, operand 0, single buffered']
    #allocation3 [shape = 's32[1]{0}', space=sflag, size = 0x4, scoped, tag = 'scoped memory for motion_model.1']
    %10 = vsyncpa [#allocation3], 0
    // Predicated region
    $region2: #{motion_model.1} parent=1 // pred_check
      _
    $region3: #{motion_model.1} parent=1 // pred_check_branch
      %12 = sbr.rel (0) target = $region5
    $region4: #{motion_model.1} parent=1 // pred_region
      _
    $region5: #{motion_model.1} parent=1 // pred_fallthru
      _
    // Predicated region
    $region6: #{motion_model.1} parent=1 // pred_check
      _
    $region7: #{motion_model.1} parent=1 // pred_check_branch
      %14 = sbr.rel (0) target = $region9
    $region8: #{motion_model.1} parent=1 // pred_region
      _
    $region9: #{motion_model.1} parent=1 // pred_fallthru
      _
    // Predicated region
    $region10: #{motion_model.1} parent=1 // pred_check
      _
    $region11: #{motion_model.1} parent=1 // pred_check_branch
      %16 = sbr.rel (0) target = $region13
    $region12: #{motion_model.1} parent=1 // pred_region
      _
    $region13: #{motion_model.1} parent=1 // pred_fallthru
      _
    %v17 = vld [vmem:[%s0] ss:$4 sm:$0xff]
    %s18 = scalar_lea.vmem %s0, 32
    %v19 = vld [vmem:[%s18] ss:$4 sm:$0xff]
    %s20 = scalar_lea.vmem %s0, 64
    %v21 = vld [vmem:[%s20] ss:$4 sm:$0x3]
    %s22 = scalar_lea.vmem %s0, 1
    %v23 = vld [vmem:[%s22] ss:$4 sm:$0xff]
    %s24 = scalar_lea.vmem %s0, 33
    %v25 = vld [vmem:[%s24] ss:$4 sm:$0xff]
    %s26 = scalar_lea.vmem %s0, 65
    %v27 = vld [vmem:[%s26] ss:$4 sm:$0x3]
    %s28 = scalar_lea.vmem %s0, 2
    %v29 = vld [vmem:[%s28] ss:$4 sm:$0xff]
    %s30 = scalar_lea.vmem %s0, 34
    %v31 = vld [vmem:[%s30] ss:$4 sm:$0xff]
    %s32 = scalar_lea.vmem %s0, 66
    %v33 = vld [vmem:[%s32] ss:$4 sm:$0x3]
    %v34 = vld [vmem:[%s1] sm:$0xff]
    %v35 = vld [vmem:[%s1 + $0x8] sm:$0xff]
    %v36 = vld [vmem:[%s1 + $0x10] sm:$0x3]
    %v37 = vld [vmem:[%s2] sm:$0xff]
    %v38 = vld [vmem:[%s2 + $0x8] sm:$0xff]
    %v39 = vld [vmem:[%s2 + $0x10] sm:$0x3]
    %v40 = vand.u32 2147483647, %v37
    %vm41 = vcmp.le.f32.partialorder %v40, 0.7853982
    %vm42 = vcmp.lt.s32.totalorder %v37, 0
    %v43 = vand.u32 %v37, 2139095040
    %v44 = vshrl.u32 %v43, 23
    %v45 = vsub.s32 %v44, 127
    %v46 = vand.u32 2147483647, %v37
    %v47 = vand.u32 %v46, 8388607
    %v48 = vor.u32 %v47, 8388608
    %v49 = vsub.s32 0, %v48
    %v50 = vadd.s32 %v45, 1
    %vm51 = vcmp.gt.s32.totalorder %v50, 0
    %v52 = vsel %vm51, %v50, 0
    %v53 = vshrl.u32 %v52, 5
    %v54 = vand.u32 %v52, 31
    %v55 = vsub.s32 32, %v54
    %v56 = vshrl.u32 683565275, %v55
    %v57 = vshll.u32 683565275, %v54
    %v58 = vshrl.u32 2475754826, %v55
    %v59 = vor.u32 %v57, %v58
    %v60 = vshll.u32 2475754826, %v54
    %v61 = vshrl.u32 2131351028, %v55
    %v62 = vor.u32 %v60, %v61
    %v63 = vshll.u32 2131351028, %v54
    %v64 = vshrl.u32 2102212464, %v55
    %v65 = vor.u32 %v63, %v64
    %v66 = vshll.u32 2102212464, %v54
    %v67 = vshrl.u32 920167782, %v55
    %v68 = vor.u32 %v66, %v67
    %v69 = vshll.u32 920167782, %v54
    %v70 = vshrl.u32 1326507024, %v55
    %v71 = vor.u32 %v69, %v70
    %vm72 = vcmp.lt.s32.totalorder %v53, 1
    %vm73 = vcmp.lt.s32.totalorder %v53, 2
    %vm74 = vcmp.lt.s32.totalorder %v53, 3
    %vm75 = vcmp.lt.s32.totalorder %v53, 4
    %v76 = vsel %vm72, %v56, %v59
    %v77 = vsel %vm75, %v65, 2102212464
    %v78 = vsel %vm74, %v62, %v77
    %v79 = vsel %vm73, %v76, %v78
    %v80 = vsel %vm72, %v59, %v62
    %v81 = vsel %vm75, %v68, 920167782
    %v82 = vsel %vm74, %v65, %v81
    %v83 = vsel %vm73, %v80, %v82
    %v84 = vsel %vm72, %v62, %v65
    %v85 = vsel %vm75, %v71, 1326507024
    %v86 = vsel %vm74, %v68, %v85
    %v87 = vsel %vm73, %v84, %v86
    %v88 = vshll.u32 %v48, 8
    %v89 = vmul.u32.u64.compose %v88, %v87
    %v90 = vextract.low.u32 %v89
    %v91 = vextract.high.u32 %v89
    %v92 = vmul.u32.u64.compose %v88, %v83
    %v93 = vextract.low.u32 %v92
    %v94 = vextract.high.u32 %v92
    %v95 = vmul.u32 %v88, %v79
    %v96 = vadd.s32 %v91, %v93
    %vm97 = vc.u32 %v91, %v93
    %v98 = vadd.s32 %v94, 1
    %v99 = vsel %vm97, %v98, %v94
    %v100 = vadd.s32 %v95, %v99
    %v101 = vadd.s32 %v100, 536870912
    %v102 = vshrl.u32 %v101, 30
    %v103 = vshll.u32 %v102, 30
    %v104 = vsub.s32 %v100, %v103
    %vm105 = vcmp.lt.s32.totalorder %v104, 0
    %v106 = vsub.s32 0, %v104
    %v107 = vsel %vm105, %v106, %v104
    %v108 = vclz %v107
    %v109 = vsub.s32 %v108, 2
    %vm110 = vcmp.gt.s32.totalorder 0, %v109
    %v111 = vsel %vm110, 0, %v109
    %v112 = vsub.s32 32, %v111
    %v113 = vshll.u32 %v104, %v111
    %v114 = vshrl.u32 %v96, %v112
    %v115 = vor.u32 %v113, %v114
    %v116 = vsub.s32 4294967266, %v111
    %v117 = vadd.s32 %v116, 127
    %v118 = vshll.u32 %v117, 23
    %v119 = vor.u32 4788187, %v118
    %v120 = vand.u32 2147483647, %v119
    %v122 = vcvt.s32.f32 %v115
    %v123 = vmul.f32 %v122, %v120
    %v124 = vxor.u32 %v123, 2147483648
    %v125 = vsel %vm42, %v124, %v123
    %v126 = vsub.s32 4, %v102
    %v127 = vsel %vm42, %v126, %v102
    %v128 = vsel %vm41, %v37, %v125
    %v129 = vsel %vm41, 0, %v127
    %v130 = vcosq.f32.pop %v128
    %v131 = vsinq.f32.pop %v128
    %vm132 = vweird.f32 %v37
    %v133 = vadd.s32 %v129, 3
    %v134 = vand.u32 %v133, 3
    %vm135 = vcmp.lt.s32.totalorder %v134, 2
    %vm136 = vcmp.eq.s32.totalorder %v134, 0
    %v137 = vxor.u32 %v131, 2147483648
    %v138 = vsel %vm136, %v130, %v137
    %vm139 = vcmp.eq.s32.totalorder %v134, 2
    %v140 = vxor.u32 %v130, 2147483648
    %v141 = vsel %vm139, %v140, %v131
    %v142 = vsel %vm135, %v138, %v141
    %v143 = vsel %vm132, nan, %v142
    %v144 = vand.u32 2147483647, %v38
    %vm145 = vcmp.le.f32.partialorder %v144, 0.7853982
    %vm146 = vcmp.lt.s32.totalorder %v38, 0
    %v147 = vand.u32 %v38, 2139095040
    %v148 = vshrl.u32 %v147, 23
    %v149 = vsub.s32 %v148, 127
    %v150 = vand.u32 2147483647, %v38
    %v151 = vand.u32 %v150, 8388607
    %v152 = vor.u32 %v151, 8388608
    %v153 = vsub.s32 0, %v152
    %v154 = vadd.s32 %v149, 1
    %vm155 = vcmp.gt.s32.totalorder %v154, 0
    %v156 = vsel %vm155, %v154, 0
    %v157 = vshrl.u32 %v156, 5
    %v158 = vand.u32 %v156, 31
    %v159 = vsub.s32 32, %v158
    %v160 = vshrl.u32 683565275, %v159
    %v161 = vshll.u32 683565275, %v158
    %v162 = vshrl.u32 2475754826, %v159
    %v163 = vor.u32 %v161, %v162
    %v164 = vshll.u32 2475754826, %v158
    %v165 = vshrl.u32 2131351028, %v159
    %v166 = vor.u32 %v164, %v165
    %v167 = vshll.u32 2131351028, %v158
    %v168 = vshrl.u32 2102212464, %v159
    %v169 = vor.u32 %v167, %v168
    %v170 = vshll.u32 2102212464, %v158
    %v171 = vshrl.u32 920167782, %v159
    %v172 = vor.u32 %v170, %v171
    %v173 = vshll.u32 920167782, %v158
    %v174 = vshrl.u32 1326507024, %v159
    %v175 = vor.u32 %v173, %v174
    %vm176 = vcmp.lt.s32.totalorder %v157, 1
    %vm177 = vcmp.lt.s32.totalorder %v157, 2
    %vm178 = vcmp.lt.s32.totalorder %v157, 3
    %vm179 = vcmp.lt.s32.totalorder %v157, 4
    %v180 = vsel %vm176, %v160, %v163
    %v181 = vsel %vm179, %v169, 2102212464
    %v182 = vsel %vm178, %v166, %v181
    %v183 = vsel %vm177, %v180, %v182
    %v184 = vsel %vm176, %v163, %v166
    %v185 = vsel %vm179, %v172, 920167782
    %v186 = vsel %vm178, %v169, %v185
    %v187 = vsel %vm177, %v184, %v186
    %v188 = vsel %vm176, %v166, %v169
    %v189 = vsel %vm179, %v175, 1326507024
    %v190 = vsel %vm178, %v172, %v189
    %v191 = vsel %vm177, %v188, %v190
    %v192 = vshll.u32 %v152, 8
    %v193 = vmul.u32.u64.compose %v192, %v191
    %v194 = vextract.low.u32 %v193
    %v195 = vextract.high.u32 %v193
    %v196 = vmul.u32.u64.compose %v192, %v187
    %v197 = vextract.low.u32 %v196
    %v198 = vextract.high.u32 %v196
    %v199 = vmul.u32 %v192, %v183
    %v200 = vadd.s32 %v195, %v197
    %vm201 = vc.u32 %v195, %v197
    %v202 = vadd.s32 %v198, 1
    %v203 = vsel %vm201, %v202, %v198
    %v204 = vadd.s32 %v199, %v203
    %v205 = vadd.s32 %v204, 536870912
    %v206 = vshrl.u32 %v205, 30
    %v207 = vshll.u32 %v206, 30
    %v208 = vsub.s32 %v204, %v207
    %vm209 = vcmp.lt.s32.totalorder %v208, 0
    %v210 = vsub.s32 0, %v208
    %v211 = vsel %vm209, %v210, %v208
    %v212 = vclz %v211
    %v213 = vsub.s32 %v212, 2
    %vm214 = vcmp.gt.s32.totalorder 0, %v213
    %v215 = vsel %vm214, 0, %v213
    %v216 = vsub.s32 32, %v215
    %v217 = vshll.u32 %v208, %v215
    %v218 = vshrl.u32 %v200, %v216
    %v219 = vor.u32 %v217, %v218
    %v220 = vsub.s32 4294967266, %v215
    %v221 = vadd.s32 %v220, 127
    %v222 = vshll.u32 %v221, 23
    %v223 = vor.u32 4788187, %v222
    %v224 = vand.u32 2147483647, %v223
    %v226 = vcvt.s32.f32 %v219
    %v227 = vmul.f32 %v226, %v224
    %v228 = vxor.u32 %v227, 2147483648
    %v229 = vsel %vm146, %v228, %v227
    %v230 = vsub.s32 4, %v206
    %v231 = vsel %vm146, %v230, %v206
    %v232 = vsel %vm145, %v38, %v229
    %v233 = vsel %vm145, 0, %v231
    %v234 = vcosq.f32.pop %v232
    %v235 = vsinq.f32.pop %v232
    %vm236 = vweird.f32 %v38
    %v237 = vadd.s32 %v233, 3
    %v238 = vand.u32 %v237, 3
    %vm239 = vcmp.lt.s32.totalorder %v238, 2
    %vm240 = vcmp.eq.s32.totalorder %v238, 0
    %v241 = vxor.u32 %v235, 2147483648
    %v242 = vsel %vm240, %v234, %v241
    %vm243 = vcmp.eq.s32.totalorder %v238, 2
    %v244 = vxor.u32 %v234, 2147483648
    %v245 = vsel %vm243, %v244, %v235
    %v246 = vsel %vm239, %v242, %v245
    %v247 = vsel %vm236, nan, %v246
    %v248 = vand.u32 2147483647, %v39
    %vm249 = vcmp.le.f32.partialorder %v248, 0.7853982
    %vm250 = vcmp.lt.s32.totalorder %v39, 0
    %v251 = vand.u32 %v39, 2139095040
    %v252 = vshrl.u32 %v251, 23
    %v253 = vsub.s32 %v252, 127
    %v254 = vand.u32 2147483647, %v39
    %v255 = vand.u32 %v254, 8388607
    %v256 = vor.u32 %v255, 8388608
    %v257 = vsub.s32 0, %v256
    %v258 = vadd.s32 %v253, 1
    %vm259 = vcmp.gt.s32.totalorder %v258, 0
    %v260 = vsel %vm259, %v258, 0
    %v261 = vshrl.u32 %v260, 5
    %v262 = vand.u32 %v260, 31
    %v263 = vsub.s32 32, %v262
    %v264 = vshrl.u32 683565275, %v263
    %v265 = vshll.u32 683565275, %v262
    %v266 = vshrl.u32 2475754826, %v263
    %v267 = vor.u32 %v265, %v266
    %v268 = vshll.u32 2475754826, %v262
    %v269 = vshrl.u32 2131351028, %v263
    %v270 = vor.u32 %v268, %v269
    %v271 = vshll.u32 2131351028, %v262
    %v272 = vshrl.u32 2102212464, %v263
    %v273 = vor.u32 %v271, %v272
    %v274 = vshll.u32 2102212464, %v262
    %v275 = vshrl.u32 920167782, %v263
    %v276 = vor.u32 %v274, %v275
    %v277 = vshll.u32 920167782, %v262
    %v278 = vshrl.u32 1326507024, %v263
    %v279 = vor.u32 %v277, %v278
    %vm280 = vcmp.lt.s32.totalorder %v261, 1
    %vm281 = vcmp.lt.s32.totalorder %v261, 2
    %vm282 = vcmp.lt.s32.totalorder %v261, 3
    %vm283 = vcmp.lt.s32.totalorder %v261, 4
    %v284 = vsel %vm280, %v264, %v267
    %v285 = vsel %vm283, %v273, 2102212464
    %v286 = vsel %vm282, %v270, %v285
    %v287 = vsel %vm281, %v284, %v286
    %v288 = vsel %vm280, %v267, %v270
    %v289 = vsel %vm283, %v276, 920167782
    %v290 = vsel %vm282, %v273, %v289
    %v291 = vsel %vm281, %v288, %v290
    %v292 = vsel %vm280, %v270, %v273
    %v293 = vsel %vm283, %v279, 1326507024
    %v294 = vsel %vm282, %v276, %v293
    %v295 = vsel %vm281, %v292, %v294
    %v296 = vshll.u32 %v256, 8
    %v297 = vmul.u32.u64.compose %v296, %v295
    %v298 = vextract.low.u32 %v297
    %v299 = vextract.high.u32 %v297
    %v300 = vmul.u32.u64.compose %v296, %v291
    %v301 = vextract.low.u32 %v300
    %v302 = vextract.high.u32 %v300
    %v303 = vmul.u32 %v296, %v287
    %v304 = vadd.s32 %v299, %v301
    %vm305 = vc.u32 %v299, %v301
    %v306 = vadd.s32 %v302, 1
    %v307 = vsel %vm305, %v306, %v302
    %v308 = vadd.s32 %v303, %v307
    %v309 = vadd.s32 %v308, 536870912
    %v310 = vshrl.u32 %v309, 30
    %v311 = vshll.u32 %v310, 30
    %v312 = vsub.s32 %v308, %v311
    %vm313 = vcmp.lt.s32.totalorder %v312, 0
    %v314 = vsub.s32 0, %v312
    %v315 = vsel %vm313, %v314, %v312
    %v316 = vclz %v315
    %v317 = vsub.s32 %v316, 2
    %vm318 = vcmp.gt.s32.totalorder 0, %v317
    %v319 = vsel %vm318, 0, %v317
    %v320 = vsub.s32 32, %v319
    %v321 = vshll.u32 %v312, %v319
    %v322 = vshrl.u32 %v304, %v320
    %v323 = vor.u32 %v321, %v322
    %v324 = vsub.s32 4294967266, %v319
    %v325 = vadd.s32 %v324, 127
    %v326 = vshll.u32 %v325, 23
    %v327 = vor.u32 4788187, %v326
    %v328 = vand.u32 2147483647, %v327
    %v330 = vcvt.s32.f32 %v323
    %v331 = vmul.f32 %v330, %v328
    %v332 = vxor.u32 %v331, 2147483648
    %v333 = vsel %vm250, %v332, %v331
    %v334 = vsub.s32 4, %v310
    %v335 = vsel %vm250, %v334, %v310
    %v336 = vsel %vm249, %v39, %v333
    %v337 = vsel %vm249, 0, %v335
    %v338 = vcosq.f32.pop %v336
    %v339 = vsinq.f32.pop %v336
    %vm340 = vweird.f32 %v39
    %v341 = vadd.s32 %v337, 3
    %v342 = vand.u32 %v341, 3
    %vm343 = vcmp.lt.s32.totalorder %v342, 2
    %vm344 = vcmp.eq.s32.totalorder %v342, 0
    %v345 = vxor.u32 %v339, 2147483648
    %v346 = vsel %vm344, %v338, %v345
    %vm347 = vcmp.eq.s32.totalorder %v342, 2
    %v348 = vxor.u32 %v338, 2147483648
    %v349 = vsel %vm347, %v348, %v339
    %v350 = vsel %vm343, %v346, %v349
    %v351 = vsel %vm340, nan, %v350
    %v352 = vand.u32 2147483647, %v37
    %vm353 = vcmp.le.f32.partialorder %v352, 0.7853982
    %vm354 = vcmp.lt.s32.totalorder %v37, 0
    %v355 = vand.u32 %v37, 2139095040
    %v356 = vshrl.u32 %v355, 23
    %v357 = vsub.s32 %v356, 127
    %v358 = vand.u32 2147483647, %v37
    %v359 = vand.u32 %v358, 8388607
    %v360 = vor.u32 %v359, 8388608
    %v361 = vsub.s32 0, %v360
    %v362 = vadd.s32 %v357, 1
    %vm363 = vcmp.gt.s32.totalorder %v362, 0
    %v364 = vsel %vm363, %v362, 0
    %v365 = vshrl.u32 %v364, 5
    %v366 = vand.u32 %v364, 31
    %v367 = vsub.s32 32, %v366
    %v368 = vshrl.u32 683565275, %v367
    %v369 = vshll.u32 683565275, %v366
    %v370 = vshrl.u32 2475754826, %v367
    %v371 = vor.u32 %v369, %v370
    %v372 = vshll.u32 2475754826, %v366
    %v373 = vshrl.u32 2131351028, %v367
    %v374 = vor.u32 %v372, %v373
    %v375 = vshll.u32 2131351028, %v366
    %v376 = vshrl.u32 2102212464, %v367
    %v377 = vor.u32 %v375, %v376
    %v378 = vshll.u32 2102212464, %v366
    %v379 = vshrl.u32 920167782, %v367
    %v380 = vor.u32 %v378, %v379
    %v381 = vshll.u32 920167782, %v366
    %v382 = vshrl.u32 1326507024, %v367
    %v383 = vor.u32 %v381, %v382
    %vm384 = vcmp.lt.s32.totalorder %v365, 1
    %vm385 = vcmp.lt.s32.totalorder %v365, 2
    %vm386 = vcmp.lt.s32.totalorder %v365, 3
    %vm387 = vcmp.lt.s32.totalorder %v365, 4
    %v388 = vsel %vm384, %v368, %v371
    %v389 = vsel %vm387, %v377, 2102212464
    %v390 = vsel %vm386, %v374, %v389
    %v391 = vsel %vm385, %v388, %v390
    %v392 = vsel %vm384, %v371, %v374
    %v393 = vsel %vm387, %v380, 920167782
    %v394 = vsel %vm386, %v377, %v393
    %v395 = vsel %vm385, %v392, %v394
    %v396 = vsel %vm384, %v374, %v377
    %v397 = vsel %vm387, %v383, 1326507024
    %v398 = vsel %vm386, %v380, %v397
    %v399 = vsel %vm385, %v396, %v398
    %v400 = vshll.u32 %v360, 8
    %v401 = vmul.u32.u64.compose %v400, %v399
    %v402 = vextract.low.u32 %v401
    %v403 = vextract.high.u32 %v401
    %v404 = vmul.u32.u64.compose %v400, %v395
    %v405 = vextract.low.u32 %v404
    %v406 = vextract.high.u32 %v404
    %v407 = vmul.u32 %v400, %v391
    %v408 = vadd.s32 %v403, %v405
    %vm409 = vc.u32 %v403, %v405
    %v410 = vadd.s32 %v406, 1
    %v411 = vsel %vm409, %v410, %v406
    %v412 = vadd.s32 %v407, %v411
    %v413 = vadd.s32 %v412, 536870912
    %v414 = vshrl.u32 %v413, 30
    %v415 = vshll.u32 %v414, 30
    %v416 = vsub.s32 %v412, %v415
    %vm417 = vcmp.lt.s32.totalorder %v416, 0
    %v418 = vsub.s32 0, %v416
    %v419 = vsel %vm417, %v418, %v416
    %v420 = vclz %v419
    %v421 = vsub.s32 %v420, 2
    %vm422 = vcmp.gt.s32.totalorder 0, %v421
    %v423 = vsel %vm422, 0, %v421
    %v424 = vsub.s32 32, %v423
    %v425 = vshll.u32 %v416, %v423
    %v426 = vshrl.u32 %v408, %v424
    %v427 = vor.u32 %v425, %v426
    %v428 = vsub.s32 4294967266, %v423
    %v429 = vadd.s32 %v428, 127
    %v430 = vshll.u32 %v429, 23
    %v431 = vor.u32 4788187, %v430
    %v432 = vand.u32 2147483647, %v431
    %v434 = vcvt.s32.f32 %v427
    %v435 = vmul.f32 %v434, %v432
    %v436 = vxor.u32 %v435, 2147483648
    %v437 = vsel %vm354, %v436, %v435
    %v438 = vsub.s32 4, %v414
    %v439 = vsel %vm354, %v438, %v414
    %v440 = vsel %vm353, %v37, %v437
    %v441 = vsel %vm353, 0, %v439
    %v442 = vcosq.f32.pop %v440
    %v443 = vsinq.f32.pop %v440
    %vm444 = vweird.f32 %v37
    %v445 = vand.u32 %v441, 3
    %vm446 = vcmp.lt.s32.totalorder %v445, 2
    %vm447 = vcmp.eq.s32.totalorder %v445, 0
    %v448 = vxor.u32 %v443, 2147483648
    %v449 = vsel %vm447, %v442, %v448
    %vm450 = vcmp.eq.s32.totalorder %v445, 2
    %v451 = vxor.u32 %v442, 2147483648
    %v452 = vsel %vm450, %v451, %v443
    %v453 = vsel %vm446, %v449, %v452
    %v454 = vsel %vm444, nan, %v453
    %v455 = vand.u32 2147483647, %v38
    %vm456 = vcmp.le.f32.partialorder %v455, 0.7853982
    %vm457 = vcmp.lt.s32.totalorder %v38, 0
    %v458 = vand.u32 %v38, 2139095040
    %v459 = vshrl.u32 %v458, 23
    %v460 = vsub.s32 %v459, 127
    %v461 = vand.u32 2147483647, %v38
    %v462 = vand.u32 %v461, 8388607
    %v463 = vor.u32 %v462, 8388608
    %v464 = vsub.s32 0, %v463
    %v465 = vadd.s32 %v460, 1
    %vm466 = vcmp.gt.s32.totalorder %v465, 0
    %v467 = vsel %vm466, %v465, 0
    %v468 = vshrl.u32 %v467, 5
    %v469 = vand.u32 %v467, 31
    %v470 = vsub.s32 32, %v469
    %v471 = vshrl.u32 683565275, %v470
    %v472 = vshll.u32 683565275, %v469
    %v473 = vshrl.u32 2475754826, %v470
    %v474 = vor.u32 %v472, %v473
    %v475 = vshll.u32 2475754826, %v469
    %v476 = vshrl.u32 2131351028, %v470
    %v477 = vor.u32 %v475, %v476
    %v478 = vshll.u32 2131351028, %v469
    %v479 = vshrl.u32 2102212464, %v470
    %v480 = vor.u32 %v478, %v479
    %v481 = vshll.u32 2102212464, %v469
    %v482 = vshrl.u32 920167782, %v470
    %v483 = vor.u32 %v481, %v482
    %v484 = vshll.u32 920167782, %v469
    %v485 = vshrl.u32 1326507024, %v470
    %v486 = vor.u32 %v484, %v485
    %vm487 = vcmp.lt.s32.totalorder %v468, 1
    %vm488 = vcmp.lt.s32.totalorder %v468, 2
    %vm489 = vcmp.lt.s32.totalorder %v468, 3
    %vm490 = vcmp.lt.s32.totalorder %v468, 4
    %v491 = vsel %vm487, %v471, %v474
    %v492 = vsel %vm490, %v480, 2102212464
    %v493 = vsel %vm489, %v477, %v492
    %v494 = vsel %vm488, %v491, %v493
    %v495 = vsel %vm487, %v474, %v477
    %v496 = vsel %vm490, %v483, 920167782
    %v497 = vsel %vm489, %v480, %v496
    %v498 = vsel %vm488, %v495, %v497
    %v499 = vsel %vm487, %v477, %v480
    %v500 = vsel %vm490, %v486, 1326507024
    %v501 = vsel %vm489, %v483, %v500
    %v502 = vsel %vm488, %v499, %v501
    %v503 = vshll.u32 %v463, 8
    %v504 = vmul.u32.u64.compose %v503, %v502
    %v505 = vextract.low.u32 %v504
    %v506 = vextract.high.u32 %v504
    %v507 = vmul.u32.u64.compose %v503, %v498
    %v508 = vextract.low.u32 %v507
    %v509 = vextract.high.u32 %v507
    %v510 = vmul.u32 %v503, %v494
    %v511 = vadd.s32 %v506, %v508
    %vm512 = vc.u32 %v506, %v508
    %v513 = vadd.s32 %v509, 1
    %v514 = vsel %vm512, %v513, %v509
    %v515 = vadd.s32 %v510, %v514
    %v516 = vadd.s32 %v515, 536870912
    %v517 = vshrl.u32 %v516, 30
    %v518 = vshll.u32 %v517, 30
    %v519 = vsub.s32 %v515, %v518
    %vm520 = vcmp.lt.s32.totalorder %v519, 0
    %v521 = vsub.s32 0, %v519
    %v522 = vsel %vm520, %v521, %v519
    %v523 = vclz %v522
    %v524 = vsub.s32 %v523, 2
    %vm525 = vcmp.gt.s32.totalorder 0, %v524
    %v526 = vsel %vm525, 0, %v524
    %v527 = vsub.s32 32, %v526
    %v528 = vshll.u32 %v519, %v526
    %v529 = vshrl.u32 %v511, %v527
    %v530 = vor.u32 %v528, %v529
    %v531 = vsub.s32 4294967266, %v526
    %v532 = vadd.s32 %v531, 127
    %v533 = vshll.u32 %v532, 23
    %v534 = vor.u32 4788187, %v533
    %v535 = vand.u32 2147483647, %v534
    %v537 = vcvt.s32.f32 %v530
    %v538 = vmul.f32 %v537, %v535
    %v539 = vxor.u32 %v538, 2147483648
    %v540 = vsel %vm457, %v539, %v538
    %v541 = vsub.s32 4, %v517
    %v542 = vsel %vm457, %v541, %v517
    %v543 = vsel %vm456, %v38, %v540
    %v544 = vsel %vm456, 0, %v542
    %v545 = vcosq.f32.pop %v543
    %v546 = vsinq.f32.pop %v543
    %vm547 = vweird.f32 %v38
    %v548 = vand.u32 %v544, 3
    %vm549 = vcmp.lt.s32.totalorder %v548, 2
    %vm550 = vcmp.eq.s32.totalorder %v548, 0
    %v551 = vxor.u32 %v546, 2147483648
    %v552 = vsel %vm550, %v545, %v551
    %vm553 = vcmp.eq.s32.totalorder %v548, 2
    %v554 = vxor.u32 %v545, 2147483648
    %v555 = vsel %vm553, %v554, %v546
    %v556 = vsel %vm549, %v552, %v555
    %v557 = vsel %vm547, nan, %v556
    %v558 = vand.u32 2147483647, %v39
    %vm559 = vcmp.le.f32.partialorder %v558, 0.7853982
    %vm560 = vcmp.lt.s32.totalorder %v39, 0
    %v561 = vand.u32 %v39, 2139095040
    %v562 = vshrl.u32 %v561, 23
    %v563 = vsub.s32 %v562, 127
    %v564 = vand.u32 2147483647, %v39
    %v565 = vand.u32 %v564, 8388607
    %v566 = vor.u32 %v565, 8388608
    %v567 = vsub.s32 0, %v566
    %v568 = vadd.s32 %v563, 1
    %vm569 = vcmp.gt.s32.totalorder %v568, 0
    %v570 = vsel %vm569, %v568, 0
    %v571 = vshrl.u32 %v570, 5
    %v572 = vand.u32 %v570, 31
    %v573 = vsub.s32 32, %v572
    %v574 = vshrl.u32 683565275, %v573
    %v575 = vshll.u32 683565275, %v572
    %v576 = vshrl.u32 2475754826, %v573
    %v577 = vor.u32 %v575, %v576
    %v578 = vshll.u32 2475754826, %v572
    %v579 = vshrl.u32 2131351028, %v573
    %v580 = vor.u32 %v578, %v579
    %v581 = vshll.u32 2131351028, %v572
    %v582 = vshrl.u32 2102212464, %v573
    %v583 = vor.u32 %v581, %v582
    %v584 = vshll.u32 2102212464, %v572
    %v585 = vshrl.u32 920167782, %v573
    %v586 = vor.u32 %v584, %v585
    %v587 = vshll.u32 920167782, %v572
    %v588 = vshrl.u32 1326507024, %v573
    %v589 = vor.u32 %v587, %v588
    %vm590 = vcmp.lt.s32.totalorder %v571, 1
    %vm591 = vcmp.lt.s32.totalorder %v571, 2
    %vm592 = vcmp.lt.s32.totalorder %v571, 3
    %vm593 = vcmp.lt.s32.totalorder %v571, 4
    %v594 = vsel %vm590, %v574, %v577
    %v595 = vsel %vm593, %v583, 2102212464
    %v596 = vsel %vm592, %v580, %v595
    %v597 = vsel %vm591, %v594, %v596
    %v598 = vsel %vm590, %v577, %v580
    %v599 = vsel %vm593, %v586, 920167782
    %v600 = vsel %vm592, %v583, %v599
    %v601 = vsel %vm591, %v598, %v600
    %v602 = vsel %vm590, %v580, %v583
    %v603 = vsel %vm593, %v589, 1326507024
    %v604 = vsel %vm592, %v586, %v603
    %v605 = vsel %vm591, %v602, %v604
    %v606 = vshll.u32 %v566, 8
    %v607 = vmul.u32.u64.compose %v606, %v605
    %v608 = vextract.low.u32 %v607
    %v609 = vextract.high.u32 %v607
    %v610 = vmul.u32.u64.compose %v606, %v601
    %v611 = vextract.low.u32 %v610
    %v612 = vextract.high.u32 %v610
    %v613 = vmul.u32 %v606, %v597
    %v614 = vadd.s32 %v609, %v611
    %vm615 = vc.u32 %v609, %v611
    %v616 = vadd.s32 %v612, 1
    %v617 = vsel %vm615, %v616, %v612
    %v618 = vadd.s32 %v613, %v617
    %v619 = vadd.s32 %v618, 536870912
    %v620 = vshrl.u32 %v619, 30
    %v621 = vshll.u32 %v620, 30
    %v622 = vsub.s32 %v618, %v621
    %vm623 = vcmp.lt.s32.totalorder %v622, 0
    %v624 = vsub.s32 0, %v622
    %v625 = vsel %vm623, %v624, %v622
    %v626 = vclz %v625
    %v627 = vsub.s32 %v626, 2
    %vm628 = vcmp.gt.s32.totalorder 0, %v627
    %v629 = vsel %vm628, 0, %v627
    %v630 = vsub.s32 32, %v629
    %v631 = vshll.u32 %v622, %v629
    %v632 = vshrl.u32 %v614, %v630
    %v633 = vor.u32 %v631, %v632
    %v634 = vsub.s32 4294967266, %v629
    %v635 = vadd.s32 %v634, 127
    %v636 = vshll.u32 %v635, 23
    %v637 = vor.u32 4788187, %v636
    %v638 = vand.u32 2147483647, %v637
    %v640 = vcvt.s32.f32 %v633
    %v641 = vmul.f32 %v640, %v638
    %v642 = vxor.u32 %v641, 2147483648
    %v643 = vsel %vm560, %v642, %v641
    %v644 = vsub.s32 4, %v620
    %v645 = vsel %vm560, %v644, %v620
    %v646 = vsel %vm559, %v39, %v643
    %v647 = vsel %vm559, 0, %v645
    %v648 = vcosq.f32.pop %v646
    %v649 = vsinq.f32.pop %v646
    %vm650 = vweird.f32 %v39
    %v651 = vand.u32 %v647, 3
    %vm652 = vcmp.lt.s32.totalorder %v651, 2
    %vm653 = vcmp.eq.s32.totalorder %v651, 0
    %v654 = vxor.u32 %v649, 2147483648
    %v655 = vsel %vm653, %v648, %v654
    %vm656 = vcmp.eq.s32.totalorder %v651, 2
    %v657 = vxor.u32 %v648, 2147483648
    %v658 = vsel %vm656, %v657, %v649
    %v659 = vsel %vm652, %v655, %v658
    %v660 = vsel %vm650, nan, %v659
    %v661 = vrcp.pop %v454
    %v662 = vmul.f32 %v143, %v661
    %v663 = vrcp.pop %v557
    %v664 = vmul.f32 %v247, %v663
    %v665 = vrcp.pop %v660
    %v666 = vmul.f32 %v351, %v665
    %v667 = vmul.f32 %v34, 0.01
    %v668 = vmul.f32 %v35, 0.01
    %v669 = vmul.f32 %v36, 0.01
    %v670 = vmul.f32 %v662, %v34
    %v671 = vmul.f32 %v664, %v35
    %v672 = vmul.f32 %v666, %v36
    %v673 = vmul.f32 %v670, 0.030284677
    %v674 = vmul.f32 %v671, 0.030284677
    %v675 = vmul.f32 %v672, 0.030284677
    %v676 = vand.u32 2147483647, %v29
    %vm677 = vcmp.le.f32.partialorder %v676, 0.7853982
    %vm678 = vcmp.lt.s32.totalorder %v29, 0
    %v679 = vand.u32 %v29, 2139095040
    %v680 = vshrl.u32 %v679, 23
    %v681 = vsub.s32 %v680, 127
    %v682 = vand.u32 2147483647, %v29
    %v683 = vand.u32 %v682, 8388607
    %v684 = vor.u32 %v683, 8388608
    %v685 = vsub.s32 0, %v684
    %v686 = vadd.s32 %v681, 1
    %vm687 = vcmp.gt.s32.totalorder %v686, 0
    %v688 = vsel %vm687, %v686, 0
    %v689 = vshrl.u32 %v688, 5
    %v690 = vand.u32 %v688, 31
    %v691 = vsub.s32 32, %v690
    %v692 = vshrl.u32 683565275, %v691
    %v693 = vshll.u32 683565275, %v690
    %v694 = vshrl.u32 2475754826, %v691
    %v695 = vor.u32 %v693, %v694
    %v696 = vshll.u32 2475754826, %v690
    %v697 = vshrl.u32 2131351028, %v691
    %v698 = vor.u32 %v696, %v697
    %v699 = vshll.u32 2131351028, %v690
    %v700 = vshrl.u32 2102212464, %v691
    %v701 = vor.u32 %v699, %v700
    %v702 = vshll.u32 2102212464, %v690
    %v703 = vshrl.u32 920167782, %v691
    %v704 = vor.u32 %v702, %v703
    %v705 = vshll.u32 920167782, %v690
    %v706 = vshrl.u32 1326507024, %v691
    %v707 = vor.u32 %v705, %v706
    %vm708 = vcmp.lt.s32.totalorder %v689, 1
    %vm709 = vcmp.lt.s32.totalorder %v689, 2
    %vm710 = vcmp.lt.s32.totalorder %v689, 3
    %vm711 = vcmp.lt.s32.totalorder %v689, 4
    %v712 = vsel %vm708, %v692, %v695
    %v713 = vsel %vm711, %v701, 2102212464
    %v714 = vsel %vm710, %v698, %v713
    %v715 = vsel %vm709, %v712, %v714
    %v716 = vsel %vm708, %v695, %v698
    %v717 = vsel %vm711, %v704, 920167782
    %v718 = vsel %vm710, %v701, %v717
    %v719 = vsel %vm709, %v716, %v718
    %v720 = vsel %vm708, %v698, %v701
    %v721 = vsel %vm711, %v707, 1326507024
    %v722 = vsel %vm710, %v704, %v721
    %v723 = vsel %vm709, %v720, %v722
    %v724 = vshll.u32 %v684, 8
    %v725 = vmul.u32.u64.compose %v724, %v723
    %v726 = vextract.low.u32 %v725
    %v727 = vextract.high.u32 %v725
    %v728 = vmul.u32.u64.compose %v724, %v719
    %v729 = vextract.low.u32 %v728
    %v730 = vextract.high.u32 %v728
    %v731 = vmul.u32 %v724, %v715
    %v732 = vadd.s32 %v727, %v729
    %vm733 = vc.u32 %v727, %v729
    %v734 = vadd.s32 %v730, 1
    %v735 = vsel %vm733, %v734, %v730
    %v736 = vadd.s32 %v731, %v735
    %v737 = vadd.s32 %v736, 536870912
    %v738 = vshrl.u32 %v737, 30
    %v739 = vshll.u32 %v738, 30
    %v740 = vsub.s32 %v736, %v739
    %vm741 = vcmp.lt.s32.totalorder %v740, 0
    %v742 = vsub.s32 0, %v740
    %v743 = vsel %vm741, %v742, %v740
    %v744 = vclz %v743
    %v745 = vsub.s32 %v744, 2
    %vm746 = vcmp.gt.s32.totalorder 0, %v745
    %v747 = vsel %vm746, 0, %v745
    %v748 = vsub.s32 32, %v747
    %v749 = vshll.u32 %v740, %v747
    %v750 = vshrl.u32 %v732, %v748
    %v751 = vor.u32 %v749, %v750
    %v752 = vsub.s32 4294967266, %v747
    %v753 = vadd.s32 %v752, 127
    %v754 = vshll.u32 %v753, 23
    %v755 = vor.u32 4788187, %v754
    %v756 = vand.u32 2147483647, %v755
    %v758 = vcvt.s32.f32 %v751
    %v759 = vmul.f32 %v758, %v756
    %v760 = vxor.u32 %v759, 2147483648
    %v761 = vsel %vm678, %v760, %v759
    %v762 = vsub.s32 4, %v738
    %v763 = vsel %vm678, %v762, %v738
    %v764 = vsel %vm677, %v29, %v761
    %v765 = vsel %vm677, 0, %v763
    %v766 = vcosq.f32.pop %v764
    %v767 = vsinq.f32.pop %v764
    %vm768 = vweird.f32 %v29
    %v769 = vand.u32 %v765, 3
    %vm770 = vcmp.lt.s32.totalorder %v769, 2
    %vm771 = vcmp.eq.s32.totalorder %v769, 0
    %v772 = vxor.u32 %v767, 2147483648
    %v773 = vsel %vm771, %v766, %v772
    %vm774 = vcmp.eq.s32.totalorder %v769, 2
    %v775 = vxor.u32 %v766, 2147483648
    %v776 = vsel %vm774, %v775, %v767
    %v777 = vsel %vm770, %v773, %v776
    %v778 = vsel %vm768, nan, %v777
    %v779 = vand.u32 2147483647, %v31
    %vm780 = vcmp.le.f32.partialorder %v779, 0.7853982
    %vm781 = vcmp.lt.s32.totalorder %v31, 0
    %v782 = vand.u32 %v31, 2139095040
    %v783 = vshrl.u32 %v782, 23
    %v784 = vsub.s32 %v783, 127
    %v785 = vand.u32 2147483647, %v31
    %v786 = vand.u32 %v785, 8388607
    %v787 = vor.u32 %v786, 8388608
    %v788 = vsub.s32 0, %v787
    %v789 = vadd.s32 %v784, 1
    %vm790 = vcmp.gt.s32.totalorder %v789, 0
    %v791 = vsel %vm790, %v789, 0
    %v792 = vshrl.u32 %v791, 5
    %v793 = vand.u32 %v791, 31
    %v794 = vsub.s32 32, %v793
    %v795 = vshrl.u32 683565275, %v794
    %v796 = vshll.u32 683565275, %v793
    %v797 = vshrl.u32 2475754826, %v794
    %v798 = vor.u32 %v796, %v797
    %v799 = vshll.u32 2475754826, %v793
    %v800 = vshrl.u32 2131351028, %v794
    %v801 = vor.u32 %v799, %v800
    %v802 = vshll.u32 2131351028, %v793
    %v803 = vshrl.u32 2102212464, %v794
    %v804 = vor.u32 %v802, %v803
    %v805 = vshll.u32 2102212464, %v793
    %v806 = vshrl.u32 920167782, %v794
    %v807 = vor.u32 %v805, %v806
    %v808 = vshll.u32 920167782, %v793
    %v809 = vshrl.u32 1326507024, %v794
    %v810 = vor.u32 %v808, %v809
    %vm811 = vcmp.lt.s32.totalorder %v792, 1
    %vm812 = vcmp.lt.s32.totalorder %v792, 2
    %vm813 = vcmp.lt.s32.totalorder %v792, 3
    %vm814 = vcmp.lt.s32.totalorder %v792, 4
    %v815 = vsel %vm811, %v795, %v798
    %v816 = vsel %vm814, %v804, 2102212464
    %v817 = vsel %vm813, %v801, %v816
    %v818 = vsel %vm812, %v815, %v817
    %v819 = vsel %vm811, %v798, %v801
    %v820 = vsel %vm814, %v807, 920167782
    %v821 = vsel %vm813, %v804, %v820
    %v822 = vsel %vm812, %v819, %v821
    %v823 = vsel %vm811, %v801, %v804
    %v824 = vsel %vm814, %v810, 1326507024
    %v825 = vsel %vm813, %v807, %v824
    %v826 = vsel %vm812, %v823, %v825
    %v827 = vshll.u32 %v787, 8
    %v828 = vmul.u32.u64.compose %v827, %v826
    %v829 = vextract.low.u32 %v828
    %v830 = vextract.high.u32 %v828
    %v831 = vmul.u32.u64.compose %v827, %v822
    %v832 = vextract.low.u32 %v831
    %v833 = vextract.high.u32 %v831
    %v834 = vmul.u32 %v827, %v818
    %v835 = vadd.s32 %v830, %v832
    %vm836 = vc.u32 %v830, %v832
    %v837 = vadd.s32 %v833, 1
    %v838 = vsel %vm836, %v837, %v833
    %v839 = vadd.s32 %v834, %v838
    %v840 = vadd.s32 %v839, 536870912
    %v841 = vshrl.u32 %v840, 30
    %v842 = vshll.u32 %v841, 30
    %v843 = vsub.s32 %v839, %v842
    %vm844 = vcmp.lt.s32.totalorder %v843, 0
    %v845 = vsub.s32 0, %v843
    %v846 = vsel %vm844, %v845, %v843
    %v847 = vclz %v846
    %v848 = vsub.s32 %v847, 2
    %vm849 = vcmp.gt.s32.totalorder 0, %v848
    %v850 = vsel %vm849, 0, %v848
    %v851 = vsub.s32 32, %v850
    %v852 = vshll.u32 %v843, %v850
    %v853 = vshrl.u32 %v835, %v851
    %v854 = vor.u32 %v852, %v853
    %v855 = vsub.s32 4294967266, %v850
    %v856 = vadd.s32 %v855, 127
    %v857 = vshll.u32 %v856, 23
    %v858 = vor.u32 4788187, %v857
    %v859 = vand.u32 2147483647, %v858
    %v861 = vcvt.s32.f32 %v854
    %v862 = vmul.f32 %v861, %v859
    %v863 = vxor.u32 %v862, 2147483648
    %v864 = vsel %vm781, %v863, %v862
    %v865 = vsub.s32 4, %v841
    %v866 = vsel %vm781, %v865, %v841
    %v867 = vsel %vm780, %v31, %v864
    %v868 = vsel %vm780, 0, %v866
    %v869 = vcosq.f32.pop %v867
    %v870 = vsinq.f32.pop %v867
    %vm871 = vweird.f32 %v31
    %v872 = vand.u32 %v868, 3
    %vm873 = vcmp.lt.s32.totalorder %v872, 2
    %vm874 = vcmp.eq.s32.totalorder %v872, 0
    %v875 = vxor.u32 %v870, 2147483648
    %v876 = vsel %vm874, %v869, %v875
    %vm877 = vcmp.eq.s32.totalorder %v872, 2
    %v878 = vxor.u32 %v869, 2147483648
    %v879 = vsel %vm877, %v878, %v870
    %v880 = vsel %vm873, %v876, %v879
    %v881 = vsel %vm871, nan, %v880
    %v882 = vand.u32 2147483647, %v33
    %vm883 = vcmp.le.f32.partialorder %v882, 0.7853982
    %vm884 = vcmp.lt.s32.totalorder %v33, 0
    %v885 = vand.u32 %v33, 2139095040
    %v886 = vshrl.u32 %v885, 23
    %v887 = vsub.s32 %v886, 127
    %v888 = vand.u32 2147483647, %v33
    %v889 = vand.u32 %v888, 8388607
    %v890 = vor.u32 %v889, 8388608
    %v891 = vsub.s32 0, %v890
    %v892 = vadd.s32 %v887, 1
    %vm893 = vcmp.gt.s32.totalorder %v892, 0
    %v894 = vsel %vm893, %v892, 0
    %v895 = vshrl.u32 %v894, 5
    %v896 = vand.u32 %v894, 31
    %v897 = vsub.s32 32, %v896
    %v898 = vshrl.u32 683565275, %v897
    %v899 = vshll.u32 683565275, %v896
    %v900 = vshrl.u32 2475754826, %v897
    %v901 = vor.u32 %v899, %v900
    %v902 = vshll.u32 2475754826, %v896
    %v903 = vshrl.u32 2131351028, %v897
    %v904 = vor.u32 %v902, %v903
    %v905 = vshll.u32 2131351028, %v896
    %v906 = vshrl.u32 2102212464, %v897
    %v907 = vor.u32 %v905, %v906
    %v908 = vshll.u32 2102212464, %v896
    %v909 = vshrl.u32 920167782, %v897
    %v910 = vor.u32 %v908, %v909
    %v911 = vshll.u32 920167782, %v896
    %v912 = vshrl.u32 1326507024, %v897
    %v913 = vor.u32 %v911, %v912
    %vm914 = vcmp.lt.s32.totalorder %v895, 1
    %vm915 = vcmp.lt.s32.totalorder %v895, 2
    %vm916 = vcmp.lt.s32.totalorder %v895, 3
    %vm917 = vcmp.lt.s32.totalorder %v895, 4
    %v918 = vsel %vm914, %v898, %v901
    %v919 = vsel %vm917, %v907, 2102212464
    %v920 = vsel %vm916, %v904, %v919
    %v921 = vsel %vm915, %v918, %v920
    %v922 = vsel %vm914, %v901, %v904
    %v923 = vsel %vm917, %v910, 920167782
    %v924 = vsel %vm916, %v907, %v923
    %v925 = vsel %vm915, %v922, %v924
    %v926 = vsel %vm914, %v904, %v907
    %v927 = vsel %vm917, %v913, 1326507024
    %v928 = vsel %vm916, %v910, %v927
    %v929 = vsel %vm915, %v926, %v928
    %v930 = vshll.u32 %v890, 8
    %v931 = vmul.u32.u64.compose %v930, %v929
    %v932 = vextract.low.u32 %v931
    %v933 = vextract.high.u32 %v931
    %v934 = vmul.u32.u64.compose %v930, %v925
    %v935 = vextract.low.u32 %v934
    %v936 = vextract.high.u32 %v934
    %v937 = vmul.u32 %v930, %v921
    %v938 = vadd.s32 %v933, %v935
    %vm939 = vc.u32 %v933, %v935
    %v940 = vadd.s32 %v936, 1
    %v941 = vsel %vm939, %v940, %v936
    %v942 = vadd.s32 %v937, %v941
    %v943 = vadd.s32 %v942, 536870912
    %v944 = vshrl.u32 %v943, 30
    %v945 = vshll.u32 %v944, 30
    %v946 = vsub.s32 %v942, %v945
    %vm947 = vcmp.lt.s32.totalorder %v946, 0
    %v948 = vsub.s32 0, %v946
    %v949 = vsel %vm947, %v948, %v946
    %v950 = vclz %v949
    %v951 = vsub.s32 %v950, 2
    %vm952 = vcmp.gt.s32.totalorder 0, %v951
    %v953 = vsel %vm952, 0, %v951
    %v954 = vsub.s32 32, %v953
    %v955 = vshll.u32 %v946, %v953
    %v956 = vshrl.u32 %v938, %v954
    %v957 = vor.u32 %v955, %v956
    %v958 = vsub.s32 4294967266, %v953
    %v959 = vadd.s32 %v958, 127
    %v960 = vshll.u32 %v959, 23
    %v961 = vor.u32 4788187, %v960
    %v962 = vand.u32 2147483647, %v961
    %v964 = vcvt.s32.f32 %v957
    %v965 = vmul.f32 %v964, %v962
    %v966 = vxor.u32 %v965, 2147483648
    %v967 = vsel %vm884, %v966, %v965
    %v968 = vsub.s32 4, %v944
    %v969 = vsel %vm884, %v968, %v944
    %v970 = vsel %vm883, %v33, %v967
    %v971 = vsel %vm883, 0, %v969
    %v972 = vcosq.f32.pop %v970
    %v973 = vsinq.f32.pop %v970
    %vm974 = vweird.f32 %v33
    %v975 = vand.u32 %v971, 3
    %vm976 = vcmp.lt.s32.totalorder %v975, 2
    %vm977 = vcmp.eq.s32.totalorder %v975, 0
    %v978 = vxor.u32 %v973, 2147483648
    %v979 = vsel %vm977, %v972, %v978
    %vm980 = vcmp.eq.s32.totalorder %v975, 2
    %v981 = vxor.u32 %v972, 2147483648
    %v982 = vsel %vm980, %v981, %v973
    %v983 = vsel %vm976, %v979, %v982
    %v984 = vsel %vm974, nan, %v983
    %v985 = vmul.f32 %v778, %v667
    %v986 = vmul.f32 %v881, %v668
    %v987 = vmul.f32 %v984, %v669
    %v988 = vadd.f32 %v17, %v985
    %v989 = vadd.f32 %v19, %v986
    %v990 = vadd.f32 %v21, %v987
    %v991 = vand.u32 2147483647, %v29
    %vm992 = vcmp.le.f32.partialorder %v991, 0.7853982
    %vm993 = vcmp.lt.s32.totalorder %v29, 0
    %v994 = vand.u32 %v29, 2139095040
    %v995 = vshrl.u32 %v994, 23
    %v996 = vsub.s32 %v995, 127
    %v997 = vand.u32 2147483647, %v29
    %v998 = vand.u32 %v997, 8388607
    %v999 = vor.u32 %v998, 8388608
    %v1000 = vsub.s32 0, %v999
    %v1001 = vadd.s32 %v996, 1
    %vm1002 = vcmp.gt.s32.totalorder %v1001, 0
    %v1003 = vsel %vm1002, %v1001, 0
    %v1004 = vshrl.u32 %v1003, 5
    %v1005 = vand.u32 %v1003, 31
    %v1006 = vsub.s32 32, %v1005
    %v1007 = vshrl.u32 683565275, %v1006
    %v1008 = vshll.u32 683565275, %v1005
    %v1009 = vshrl.u32 2475754826, %v1006
    %v1010 = vor.u32 %v1008, %v1009
    %v1011 = vshll.u32 2475754826, %v1005
    %v1012 = vshrl.u32 2131351028, %v1006
    %v1013 = vor.u32 %v1011, %v1012
    %v1014 = vshll.u32 2131351028, %v1005
    %v1015 = vshrl.u32 2102212464, %v1006
    %v1016 = vor.u32 %v1014, %v1015
    %v1017 = vshll.u32 2102212464, %v1005
    %v1018 = vshrl.u32 920167782, %v1006
    %v1019 = vor.u32 %v1017, %v1018
    %v1020 = vshll.u32 920167782, %v1005
    %v1021 = vshrl.u32 1326507024, %v1006
    %v1022 = vor.u32 %v1020, %v1021
    %vm1023 = vcmp.lt.s32.totalorder %v1004, 1
    %vm1024 = vcmp.lt.s32.totalorder %v1004, 2
    %vm1025 = vcmp.lt.s32.totalorder %v1004, 3
    %vm1026 = vcmp.lt.s32.totalorder %v1004, 4
    %v1027 = vsel %vm1023, %v1007, %v1010
    %v1028 = vsel %vm1026, %v1016, 2102212464
    %v1029 = vsel %vm1025, %v1013, %v1028
    %v1030 = vsel %vm1024, %v1027, %v1029
    %v1031 = vsel %vm1023, %v1010, %v1013
    %v1032 = vsel %vm1026, %v1019, 920167782
    %v1033 = vsel %vm1025, %v1016, %v1032
    %v1034 = vsel %vm1024, %v1031, %v1033
    %v1035 = vsel %vm1023, %v1013, %v1016
    %v1036 = vsel %vm1026, %v1022, 1326507024
    %v1037 = vsel %vm1025, %v1019, %v1036
    %v1038 = vsel %vm1024, %v1035, %v1037
    %v1039 = vshll.u32 %v999, 8
    %v1040 = vmul.u32.u64.compose %v1039, %v1038
    %v1041 = vextract.low.u32 %v1040
    %v1042 = vextract.high.u32 %v1040
    %v1043 = vmul.u32.u64.compose %v1039, %v1034
    %v1044 = vextract.low.u32 %v1043
    %v1045 = vextract.high.u32 %v1043
    %v1046 = vmul.u32 %v1039, %v1030
    %v1047 = vadd.s32 %v1042, %v1044
    %vm1048 = vc.u32 %v1042, %v1044
    %v1049 = vadd.s32 %v1045, 1
    %v1050 = vsel %vm1048, %v1049, %v1045
    %v1051 = vadd.s32 %v1046, %v1050
    %v1052 = vadd.s32 %v1051, 536870912
    %v1053 = vshrl.u32 %v1052, 30
    %v1054 = vshll.u32 %v1053, 30
    %v1055 = vsub.s32 %v1051, %v1054
    %vm1056 = vcmp.lt.s32.totalorder %v1055, 0
    %v1057 = vsub.s32 0, %v1055
    %v1058 = vsel %vm1056, %v1057, %v1055
    %v1059 = vclz %v1058
    %v1060 = vsub.s32 %v1059, 2
    %vm1061 = vcmp.gt.s32.totalorder 0, %v1060
    %v1062 = vsel %vm1061, 0, %v1060
    %v1063 = vsub.s32 32, %v1062
    %v1064 = vshll.u32 %v1055, %v1062
    %v1065 = vshrl.u32 %v1047, %v1063
    %v1066 = vor.u32 %v1064, %v1065
    %v1067 = vsub.s32 4294967266, %v1062
    %v1068 = vadd.s32 %v1067, 127
    %v1069 = vshll.u32 %v1068, 23
    %v1070 = vor.u32 4788187, %v1069
    %v1071 = vand.u32 2147483647, %v1070
    %v1073 = vcvt.s32.f32 %v1066
    %v1074 = vmul.f32 %v1073, %v1071
    %v1075 = vxor.u32 %v1074, 2147483648
    %v1076 = vsel %vm993, %v1075, %v1074
    %v1077 = vsub.s32 4, %v1053
    %v1078 = vsel %vm993, %v1077, %v1053
    %v1079 = vsel %vm992, %v29, %v1076
    %v1080 = vsel %vm992, 0, %v1078
    %v1081 = vcosq.f32.pop %v1079
    %v1082 = vsinq.f32.pop %v1079
    %vm1083 = vweird.f32 %v29
    %v1084 = vadd.s32 %v1080, 3
    %v1085 = vand.u32 %v1084, 3
    %vm1086 = vcmp.lt.s32.totalorder %v1085, 2
    %vm1087 = vcmp.eq.s32.totalorder %v1085, 0
    %v1088 = vxor.u32 %v1082, 2147483648
    %v1089 = vsel %vm1087, %v1081, %v1088
    %vm1090 = vcmp.eq.s32.totalorder %v1085, 2
    %v1091 = vxor.u32 %v1081, 2147483648
    %v1092 = vsel %vm1090, %v1091, %v1082
    %v1093 = vsel %vm1086, %v1089, %v1092
    %v1094 = vsel %vm1083, nan, %v1093
    %v1095 = vand.u32 2147483647, %v31
    %vm1096 = vcmp.le.f32.partialorder %v1095, 0.7853982
    %vm1097 = vcmp.lt.s32.totalorder %v31, 0
    %v1098 = vand.u32 %v31, 2139095040
    %v1099 = vshrl.u32 %v1098, 23
    %v1100 = vsub.s32 %v1099, 127
    %v1101 = vand.u32 2147483647, %v31
    %v1102 = vand.u32 %v1101, 8388607
    %v1103 = vor.u32 %v1102, 8388608
    %v1104 = vsub.s32 0, %v1103
    %v1105 = vadd.s32 %v1100, 1
    %vm1106 = vcmp.gt.s32.totalorder %v1105, 0
    %v1107 = vsel %vm1106, %v1105, 0
    %v1108 = vshrl.u32 %v1107, 5
    %v1109 = vand.u32 %v1107, 31
    %v1110 = vsub.s32 32, %v1109
    %v1111 = vshrl.u32 683565275, %v1110
    %v1112 = vshll.u32 683565275, %v1109
    %v1113 = vshrl.u32 2475754826, %v1110
    %v1114 = vor.u32 %v1112, %v1113
    %v1115 = vshll.u32 2475754826, %v1109
    %v1116 = vshrl.u32 2131351028, %v1110
    %v1117 = vor.u32 %v1115, %v1116
    %v1118 = vshll.u32 2131351028, %v1109
    %v1119 = vshrl.u32 2102212464, %v1110
    %v1120 = vor.u32 %v1118, %v1119
    %v1121 = vshll.u32 2102212464, %v1109
    %v1122 = vshrl.u32 920167782, %v1110
    %v1123 = vor.u32 %v1121, %v1122
    %v1124 = vshll.u32 920167782, %v1109
    %v1125 = vshrl.u32 1326507024, %v1110
    %v1126 = vor.u32 %v1124, %v1125
    %vm1127 = vcmp.lt.s32.totalorder %v1108, 1
    %vm1128 = vcmp.lt.s32.totalorder %v1108, 2
    %vm1129 = vcmp.lt.s32.totalorder %v1108, 3
    %vm1130 = vcmp.lt.s32.totalorder %v1108, 4
    %v1131 = vsel %vm1127, %v1111, %v1114
    %v1132 = vsel %vm1130, %v1120, 2102212464
    %v1133 = vsel %vm1129, %v1117, %v1132
    %v1134 = vsel %vm1128, %v1131, %v1133
    %v1135 = vsel %vm1127, %v1114, %v1117
    %v1136 = vsel %vm1130, %v1123, 920167782
    %v1137 = vsel %vm1129, %v1120, %v1136
    %v1138 = vsel %vm1128, %v1135, %v1137
    %v1139 = vsel %vm1127, %v1117, %v1120
    %v1140 = vsel %vm1130, %v1126, 1326507024
    %v1141 = vsel %vm1129, %v1123, %v1140
    %v1142 = vsel %vm1128, %v1139, %v1141
    %v1143 = vshll.u32 %v1103, 8
    %v1144 = vmul.u32.u64.compose %v1143, %v1142
    %v1145 = vextract.low.u32 %v1144
    %v1146 = vextract.high.u32 %v1144
    %v1147 = vmul.u32.u64.compose %v1143, %v1138
    %v1148 = vextract.low.u32 %v1147
    %v1149 = vextract.high.u32 %v1147
    %v1150 = vmul.u32 %v1143, %v1134
    %v1151 = vadd.s32 %v1146, %v1148
    %vm1152 = vc.u32 %v1146, %v1148
    %v1153 = vadd.s32 %v1149, 1
    %v1154 = vsel %vm1152, %v1153, %v1149
    %v1155 = vadd.s32 %v1150, %v1154
    %v1156 = vadd.s32 %v1155, 536870912
    %v1157 = vshrl.u32 %v1156, 30
    %v1158 = vshll.u32 %v1157, 30
    %v1159 = vsub.s32 %v1155, %v1158
    %vm1160 = vcmp.lt.s32.totalorder %v1159, 0
    %v1161 = vsub.s32 0, %v1159
    %v1162 = vsel %vm1160, %v1161, %v1159
    %v1163 = vclz %v1162
    %v1164 = vsub.s32 %v1163, 2
    %vm1165 = vcmp.gt.s32.totalorder 0, %v1164
    %v1166 = vsel %vm1165, 0, %v1164
    %v1167 = vsub.s32 32, %v1166
    %v1168 = vshll.u32 %v1159, %v1166
    %v1169 = vshrl.u32 %v1151, %v1167
    %v1170 = vor.u32 %v1168, %v1169
    %v1171 = vsub.s32 4294967266, %v1166
    %v1172 = vadd.s32 %v1171, 127
    %v1173 = vshll.u32 %v1172, 23
    %v1174 = vor.u32 4788187, %v1173
    %v1175 = vand.u32 2147483647, %v1174
    %v1177 = vcvt.s32.f32 %v1170
    %v1178 = vmul.f32 %v1177, %v1175
    %v1179 = vxor.u32 %v1178, 2147483648
    %v1180 = vsel %vm1097, %v1179, %v1178
    %v1181 = vsub.s32 4, %v1157
    %v1182 = vsel %vm1097, %v1181, %v1157
    %v1183 = vsel %vm1096, %v31, %v1180
    %v1184 = vsel %vm1096, 0, %v1182
    %v1185 = vcosq.f32.pop %v1183
    %v1186 = vsinq.f32.pop %v1183
    %vm1187 = vweird.f32 %v31
    %v1188 = vadd.s32 %v1184, 3
    %v1189 = vand.u32 %v1188, 3
    %vm1190 = vcmp.lt.s32.totalorder %v1189, 2
    %vm1191 = vcmp.eq.s32.totalorder %v1189, 0
    %v1192 = vxor.u32 %v1186, 2147483648
    %v1193 = vsel %vm1191, %v1185, %v1192
    %vm1194 = vcmp.eq.s32.totalorder %v1189, 2
    %v1195 = vxor.u32 %v1185, 2147483648
    %v1196 = vsel %vm1194, %v1195, %v1186
    %v1197 = vsel %vm1190, %v1193, %v1196
    %v1198 = vsel %vm1187, nan, %v1197
    %v1199 = vand.u32 2147483647, %v33
    %vm1200 = vcmp.le.f32.partialorder %v1199, 0.7853982
    %vm1201 = vcmp.lt.s32.totalorder %v33, 0
    %v1202 = vand.u32 %v33, 2139095040
    %v1203 = vshrl.u32 %v1202, 23
    %v1204 = vsub.s32 %v1203, 127
    %v1205 = vand.u32 2147483647, %v33
    %v1206 = vand.u32 %v1205, 8388607
    %v1207 = vor.u32 %v1206, 8388608
    %v1208 = vsub.s32 0, %v1207
    %v1209 = vadd.s32 %v1204, 1
    %vm1210 = vcmp.gt.s32.totalorder %v1209, 0
    %v1211 = vsel %vm1210, %v1209, 0
    %v1212 = vshrl.u32 %v1211, 5
    %v1213 = vand.u32 %v1211, 31
    %v1214 = vsub.s32 32, %v1213
    %v1215 = vshrl.u32 683565275, %v1214
    %v1216 = vshll.u32 683565275, %v1213
    %v1217 = vshrl.u32 2475754826, %v1214
    %v1218 = vor.u32 %v1216, %v1217
    %v1219 = vshll.u32 2475754826, %v1213
    %v1220 = vshrl.u32 2131351028, %v1214
    %v1221 = vor.u32 %v1219, %v1220
    %v1222 = vshll.u32 2131351028, %v1213
    %v1223 = vshrl.u32 2102212464, %v1214
    %v1224 = vor.u32 %v1222, %v1223
    %v1225 = vshll.u32 2102212464, %v1213
    %v1226 = vshrl.u32 920167782, %v1214
    %v1227 = vor.u32 %v1225, %v1226
    %v1228 = vshll.u32 920167782, %v1213
    %v1229 = vshrl.u32 1326507024, %v1214
    %v1230 = vor.u32 %v1228, %v1229
    %vm1231 = vcmp.lt.s32.totalorder %v1212, 1
    %vm1232 = vcmp.lt.s32.totalorder %v1212, 2
    %vm1233 = vcmp.lt.s32.totalorder %v1212, 3
    %vm1234 = vcmp.lt.s32.totalorder %v1212, 4
    %v1235 = vsel %vm1231, %v1215, %v1218
    %v1236 = vsel %vm1234, %v1224, 2102212464
    %v1237 = vsel %vm1233, %v1221, %v1236
    %v1238 = vsel %vm1232, %v1235, %v1237
    %v1239 = vsel %vm1231, %v1218, %v1221
    %v1240 = vsel %vm1234, %v1227, 920167782
    %v1241 = vsel %vm1233, %v1224, %v1240
    %v1242 = vsel %vm1232, %v1239, %v1241
    %v1243 = vsel %vm1231, %v1221, %v1224
    %v1244 = vsel %vm1234, %v1230, 1326507024
    %v1245 = vsel %vm1233, %v1227, %v1244
    %v1246 = vsel %vm1232, %v1243, %v1245
    %v1247 = vshll.u32 %v1207, 8
    %v1248 = vmul.u32.u64.compose %v1247, %v1246
    %v1249 = vextract.low.u32 %v1248
    %v1250 = vextract.high.u32 %v1248
    %v1251 = vmul.u32.u64.compose %v1247, %v1242
    %v1252 = vextract.low.u32 %v1251
    %v1253 = vextract.high.u32 %v1251
    %v1254 = vmul.u32 %v1247, %v1238
    %v1255 = vadd.s32 %v1250, %v1252
    %vm1256 = vc.u32 %v1250, %v1252
    %v1257 = vadd.s32 %v1253, 1
    %v1258 = vsel %vm1256, %v1257, %v1253
    %v1259 = vadd.s32 %v1254, %v1258
    %v1260 = vadd.s32 %v1259, 536870912
    %v1261 = vshrl.u32 %v1260, 30
    %v1262 = vshll.u32 %v1261, 30
    %v1263 = vsub.s32 %v1259, %v1262
    %vm1264 = vcmp.lt.s32.totalorder %v1263, 0
    %v1265 = vsub.s32 0, %v1263
    %v1266 = vsel %vm1264, %v1265, %v1263
    %v1267 = vclz %v1266
    %v1268 = vsub.s32 %v1267, 2
    %vm1269 = vcmp.gt.s32.totalorder 0, %v1268
    %v1270 = vsel %vm1269, 0, %v1268
    %v1271 = vsub.s32 32, %v1270
    %v1272 = vshll.u32 %v1263, %v1270
    %v1273 = vshrl.u32 %v1255, %v1271
    %v1274 = vor.u32 %v1272, %v1273
    %v1275 = vsub.s32 4294967266, %v1270
    %v1276 = vadd.s32 %v1275, 127
    %v1277 = vshll.u32 %v1276, 23
    %v1278 = vor.u32 4788187, %v1277
    %v1279 = vand.u32 2147483647, %v1278
    %v1281 = vcvt.s32.f32 %v1274
    %v1282 = vmul.f32 %v1281, %v1279
    %v1283 = vxor.u32 %v1282, 2147483648
    %v1284 = vsel %vm1201, %v1283, %v1282
    %v1285 = vsub.s32 4, %v1261
    %v1286 = vsel %vm1201, %v1285, %v1261
    %v1287 = vsel %vm1200, %v33, %v1284
    %v1288 = vsel %vm1200, 0, %v1286
    %v1289 = vcosq.f32.pop %v1287
    %v1290 = vsinq.f32.pop %v1287
    %vm1291 = vweird.f32 %v33
    %v1292 = vadd.s32 %v1288, 3
    %v1293 = vand.u32 %v1292, 3
    %vm1294 = vcmp.lt.s32.totalorder %v1293, 2
    %vm1295 = vcmp.eq.s32.totalorder %v1293, 0
    %v1296 = vxor.u32 %v1290, 2147483648
    %v1297 = vsel %vm1295, %v1289, %v1296
    %vm1298 = vcmp.eq.s32.totalorder %v1293, 2
    %v1299 = vxor.u32 %v1289, 2147483648
    %v1300 = vsel %vm1298, %v1299, %v1290
    %v1301 = vsel %vm1294, %v1297, %v1300
    %v1302 = vsel %vm1291, nan, %v1301
    %v1303 = vmul.f32 %v1094, %v667
    %v1304 = vmul.f32 %v1198, %v668
    %v1305 = vmul.f32 %v1302, %v669
    %v1306 = vadd.f32 %v23, %v1303
    %v1307 = vadd.f32 %v25, %v1304
    %v1308 = vadd.f32 %v27, %v1305
    %v1309 = vadd.f32 %v29, %v673
    %v1310 = vadd.f32 %v31, %v674
    %v1311 = vadd.f32 %v33, %v675
    %v1312 = vadd.f32 %v1309, 3.1415927
    %v1313 = vadd.f32 %v1310, 3.1415927
    %v1314 = vadd.f32 %v1311, 3.1415927
    %v1315 = vmul.f32 %v1312, 0.15915494
    %v1316 = vmul.f32 %v1313, 0.15915494
    %v1317 = vmul.f32 %v1314, 0.15915494
    %v1318 = vfloor.f32 %v1315
    %v1319 = vfloor.f32 %v1316
    %v1320 = vfloor.f32 %v1317
    %v1321 = vmul.f32 %v1318, 6.2831855
    %v1322 = vmul.f32 %v1319, 6.2831855
    %v1323 = vmul.f32 %v1320, 6.2831855
    %v1324 = vsub.f32 %v1312, %v1321
    %v1325 = vsub.f32 %v1313, %v1322
    %v1326 = vsub.f32 %v1314, %v1323
    %v1327 = vsub.f32 %v1324, 3.1415927
    %v1328 = vsub.f32 %v1325, 3.1415927
    %v1329 = vsub.f32 %v1326, 3.1415927
    %v1330 = vand.u32 2147483647, %v1327
    %vm1331 = vcmp.le.f32.partialorder %v1330, 0.7853982
    %vm1332 = vcmp.lt.s32.totalorder %v1327, 0
    %v1333 = vand.u32 %v1327, 2139095040
    %v1334 = vshrl.u32 %v1333, 23
    %v1335 = vsub.s32 %v1334, 127
    %v1336 = vand.u32 2147483647, %v1327
    %v1337 = vand.u32 %v1336, 8388607
    %v1338 = vor.u32 %v1337, 8388608
    %v1339 = vsub.s32 0, %v1338
    %v1340 = vadd.s32 %v1335, 1
    %vm1341 = vcmp.gt.s32.totalorder %v1340, 0
    %v1342 = vsel %vm1341, %v1340, 0
    %v1343 = vshrl.u32 %v1342, 5
    %v1344 = vand.u32 %v1342, 31
    %v1345 = vsub.s32 32, %v1344
    %v1346 = vshrl.u32 683565275, %v1345
    %v1347 = vshll.u32 683565275, %v1344
    %v1348 = vshrl.u32 2475754826, %v1345
    %v1349 = vor.u32 %v1347, %v1348
    %v1350 = vshll.u32 2475754826, %v1344
    %v1351 = vshrl.u32 2131351028, %v1345
    %v1352 = vor.u32 %v1350, %v1351
    %v1353 = vshll.u32 2131351028, %v1344
    %v1354 = vshrl.u32 2102212464, %v1345
    %v1355 = vor.u32 %v1353, %v1354
    %v1356 = vshll.u32 2102212464, %v1344
    %v1357 = vshrl.u32 920167782, %v1345
    %v1358 = vor.u32 %v1356, %v1357
    %v1359 = vshll.u32 920167782, %v1344
    %v1360 = vshrl.u32 1326507024, %v1345
    %v1361 = vor.u32 %v1359, %v1360
    %vm1362 = vcmp.lt.s32.totalorder %v1343, 1
    %vm1363 = vcmp.lt.s32.totalorder %v1343, 2
    %vm1364 = vcmp.lt.s32.totalorder %v1343, 3
    %vm1365 = vcmp.lt.s32.totalorder %v1343, 4
    %v1366 = vsel %vm1362, %v1346, %v1349
    %v1367 = vsel %vm1365, %v1355, 2102212464
    %v1368 = vsel %vm1364, %v1352, %v1367
    %v1369 = vsel %vm1363, %v1366, %v1368
    %v1370 = vsel %vm1362, %v1349, %v1352
    %v1371 = vsel %vm1365, %v1358, 920167782
    %v1372 = vsel %vm1364, %v1355, %v1371
    %v1373 = vsel %vm1363, %v1370, %v1372
    %v1374 = vsel %vm1362, %v1352, %v1355
    %v1375 = vsel %vm1365, %v1361, 1326507024
    %v1376 = vsel %vm1364, %v1358, %v1375
    %v1377 = vsel %vm1363, %v1374, %v1376
    %v1378 = vshll.u32 %v1338, 8
    %v1379 = vmul.u32.u64.compose %v1378, %v1377
    %v1380 = vextract.low.u32 %v1379
    %v1381 = vextract.high.u32 %v1379
    %v1382 = vmul.u32.u64.compose %v1378, %v1373
    %v1383 = vextract.low.u32 %v1382
    %v1384 = vextract.high.u32 %v1382
    %v1385 = vmul.u32 %v1378, %v1369
    %v1386 = vadd.s32 %v1381, %v1383
    %vm1387 = vc.u32 %v1381, %v1383
    %v1388 = vadd.s32 %v1384, 1
    %v1389 = vsel %vm1387, %v1388, %v1384
    %v1390 = vadd.s32 %v1385, %v1389
    %v1391 = vadd.s32 %v1390, 536870912
    %v1392 = vshrl.u32 %v1391, 30
    %v1393 = vshll.u32 %v1392, 30
    %v1394 = vsub.s32 %v1390, %v1393
    %vm1395 = vcmp.lt.s32.totalorder %v1394, 0
    %v1396 = vsub.s32 0, %v1394
    %v1397 = vsel %vm1395, %v1396, %v1394
    %v1398 = vclz %v1397
    %v1399 = vsub.s32 %v1398, 2
    %vm1400 = vcmp.gt.s32.totalorder 0, %v1399
    %v1401 = vsel %vm1400, 0, %v1399
    %v1402 = vsub.s32 32, %v1401
    %v1403 = vshll.u32 %v1394, %v1401
    %v1404 = vshrl.u32 %v1386, %v1402
    %v1405 = vor.u32 %v1403, %v1404
    %v1406 = vsub.s32 4294967266, %v1401
    %v1407 = vadd.s32 %v1406, 127
    %v1408 = vshll.u32 %v1407, 23
    %v1409 = vor.u32 4788187, %v1408
    %v1410 = vand.u32 2147483647, %v1409
    %v1412 = vcvt.s32.f32 %v1405
    %v1413 = vmul.f32 %v1412, %v1410
    %v1414 = vxor.u32 %v1413, 2147483648
    %v1415 = vsel %vm1332, %v1414, %v1413
    %v1416 = vsub.s32 4, %v1392
    %v1417 = vsel %vm1332, %v1416, %v1392
    %v1418 = vsel %vm1331, %v1327, %v1415
    %v1419 = vsel %vm1331, 0, %v1417
    %v1420 = vcosq.f32.pop %v1418
    %v1421 = vsinq.f32.pop %v1418
    %vm1422 = vweird.f32 %v1327
    %v1423 = vand.u32 %v1419, 3
    %vm1424 = vcmp.lt.s32.totalorder %v1423, 2
    %vm1425 = vcmp.eq.s32.totalorder %v1423, 0
    %v1426 = vxor.u32 %v1421, 2147483648
    %v1427 = vsel %vm1425, %v1420, %v1426
    %vm1428 = vcmp.eq.s32.totalorder %v1423, 2
    %v1429 = vxor.u32 %v1420, 2147483648
    %v1430 = vsel %vm1428, %v1429, %v1421
    %v1431 = vsel %vm1424, %v1427, %v1430
    %v1432 = vsel %vm1422, nan, %v1431
    %v1433 = vand.u32 2147483647, %v1328
    %vm1434 = vcmp.le.f32.partialorder %v1433, 0.7853982
    %vm1435 = vcmp.lt.s32.totalorder %v1328, 0
    %v1436 = vand.u32 %v1328, 2139095040
    %v1437 = vshrl.u32 %v1436, 23
    %v1438 = vsub.s32 %v1437, 127
    %v1439 = vand.u32 2147483647, %v1328
    %v1440 = vand.u32 %v1439, 8388607
    %v1441 = vor.u32 %v1440, 8388608
    %v1442 = vsub.s32 0, %v1441
    %v1443 = vadd.s32 %v1438, 1
    %vm1444 = vcmp.gt.s32.totalorder %v1443, 0
    %v1445 = vsel %vm1444, %v1443, 0
    %v1446 = vshrl.u32 %v1445, 5
    %v1447 = vand.u32 %v1445, 31
    %v1448 = vsub.s32 32, %v1447
    %v1449 = vshrl.u32 683565275, %v1448
    %v1450 = vshll.u32 683565275, %v1447
    %v1451 = vshrl.u32 2475754826, %v1448
    %v1452 = vor.u32 %v1450, %v1451
    %v1453 = vshll.u32 2475754826, %v1447
    %v1454 = vshrl.u32 2131351028, %v1448
    %v1455 = vor.u32 %v1453, %v1454
    %v1456 = vshll.u32 2131351028, %v1447
    %v1457 = vshrl.u32 2102212464, %v1448
    %v1458 = vor.u32 %v1456, %v1457
    %v1459 = vshll.u32 2102212464, %v1447
    %v1460 = vshrl.u32 920167782, %v1448
    %v1461 = vor.u32 %v1459, %v1460
    %v1462 = vshll.u32 920167782, %v1447
    %v1463 = vshrl.u32 1326507024, %v1448
    %v1464 = vor.u32 %v1462, %v1463
    %vm1465 = vcmp.lt.s32.totalorder %v1446, 1
    %vm1466 = vcmp.lt.s32.totalorder %v1446, 2
    %vm1467 = vcmp.lt.s32.totalorder %v1446, 3
    %vm1468 = vcmp.lt.s32.totalorder %v1446, 4
    %v1469 = vsel %vm1465, %v1449, %v1452
    %v1470 = vsel %vm1468, %v1458, 2102212464
    %v1471 = vsel %vm1467, %v1455, %v1470
    %v1472 = vsel %vm1466, %v1469, %v1471
    %v1473 = vsel %vm1465, %v1452, %v1455
    %v1474 = vsel %vm1468, %v1461, 920167782
    %v1475 = vsel %vm1467, %v1458, %v1474
    %v1476 = vsel %vm1466, %v1473, %v1475
    %v1477 = vsel %vm1465, %v1455, %v1458
    %v1478 = vsel %vm1468, %v1464, 1326507024
    %v1479 = vsel %vm1467, %v1461, %v1478
    %v1480 = vsel %vm1466, %v1477, %v1479
    %v1481 = vshll.u32 %v1441, 8
    %v1482 = vmul.u32.u64.compose %v1481, %v1480
    %v1483 = vextract.low.u32 %v1482
    %v1484 = vextract.high.u32 %v1482
    %v1485 = vmul.u32.u64.compose %v1481, %v1476
    %v1486 = vextract.low.u32 %v1485
    %v1487 = vextract.high.u32 %v1485
    %v1488 = vmul.u32 %v1481, %v1472
    %v1489 = vadd.s32 %v1484, %v1486
    %vm1490 = vc.u32 %v1484, %v1486
    %v1491 = vadd.s32 %v1487, 1
    %v1492 = vsel %vm1490, %v1491, %v1487
    %v1493 = vadd.s32 %v1488, %v1492
    %v1494 = vadd.s32 %v1493, 536870912
    %v1495 = vshrl.u32 %v1494, 30
    %v1496 = vshll.u32 %v1495, 30
    %v1497 = vsub.s32 %v1493, %v1496
    %vm1498 = vcmp.lt.s32.totalorder %v1497, 0
    %v1499 = vsub.s32 0, %v1497
    %v1500 = vsel %vm1498, %v1499, %v1497
    %v1501 = vclz %v1500
    %v1502 = vsub.s32 %v1501, 2
    %vm1503 = vcmp.gt.s32.totalorder 0, %v1502
    %v1504 = vsel %vm1503, 0, %v1502
    %v1505 = vsub.s32 32, %v1504
    %v1506 = vshll.u32 %v1497, %v1504
    %v1507 = vshrl.u32 %v1489, %v1505
    %v1508 = vor.u32 %v1506, %v1507
    %v1509 = vsub.s32 4294967266, %v1504
    %v1510 = vadd.s32 %v1509, 127
    %v1511 = vshll.u32 %v1510, 23
    %v1512 = vor.u32 4788187, %v1511
    %v1513 = vand.u32 2147483647, %v1512
    %v1515 = vcvt.s32.f32 %v1508
    %v1516 = vmul.f32 %v1515, %v1513
    %v1517 = vxor.u32 %v1516, 2147483648
    %v1518 = vsel %vm1435, %v1517, %v1516
    %v1519 = vsub.s32 4, %v1495
    %v1520 = vsel %vm1435, %v1519, %v1495
    %v1521 = vsel %vm1434, %v1328, %v1518
    %v1522 = vsel %vm1434, 0, %v1520
    %v1523 = vcosq.f32.pop %v1521
    %v1524 = vsinq.f32.pop %v1521
    %vm1525 = vweird.f32 %v1328
    %v1526 = vand.u32 %v1522, 3
    %vm1527 = vcmp.lt.s32.totalorder %v1526, 2
    %vm1528 = vcmp.eq.s32.totalorder %v1526, 0
    %v1529 = vxor.u32 %v1524, 2147483648
    %v1530 = vsel %vm1528, %v1523, %v1529
    %vm1531 = vcmp.eq.s32.totalorder %v1526, 2
    %v1532 = vxor.u32 %v1523, 2147483648
    %v1533 = vsel %vm1531, %v1532, %v1524
    %v1534 = vsel %vm1527, %v1530, %v1533
    %v1535 = vsel %vm1525, nan, %v1534
    %v1536 = vand.u32 2147483647, %v1329
    %vm1537 = vcmp.le.f32.partialorder %v1536, 0.7853982
    %vm1538 = vcmp.lt.s32.totalorder %v1329, 0
    %v1539 = vand.u32 %v1329, 2139095040
    %v1540 = vshrl.u32 %v1539, 23
    %v1541 = vsub.s32 %v1540, 127
    %v1542 = vand.u32 2147483647, %v1329
    %v1543 = vand.u32 %v1542, 8388607
    %v1544 = vor.u32 %v1543, 8388608
    %v1545 = vsub.s32 0, %v1544
    %v1546 = vadd.s32 %v1541, 1
    %vm1547 = vcmp.gt.s32.totalorder %v1546, 0
    %v1548 = vsel %vm1547, %v1546, 0
    %v1549 = vshrl.u32 %v1548, 5
    %v1550 = vand.u32 %v1548, 31
    %v1551 = vsub.s32 32, %v1550
    %v1552 = vshrl.u32 683565275, %v1551
    %v1553 = vshll.u32 683565275, %v1550
    %v1554 = vshrl.u32 2475754826, %v1551
    %v1555 = vor.u32 %v1553, %v1554
    %v1556 = vshll.u32 2475754826, %v1550
    %v1557 = vshrl.u32 2131351028, %v1551
    %v1558 = vor.u32 %v1556, %v1557
    %v1559 = vshll.u32 2131351028, %v1550
    %v1560 = vshrl.u32 2102212464, %v1551
    %v1561 = vor.u32 %v1559, %v1560
    %v1562 = vshll.u32 2102212464, %v1550
    %v1563 = vshrl.u32 920167782, %v1551
    %v1564 = vor.u32 %v1562, %v1563
    %v1565 = vshll.u32 920167782, %v1550
    %v1566 = vshrl.u32 1326507024, %v1551
    %v1567 = vor.u32 %v1565, %v1566
    %vm1568 = vcmp.lt.s32.totalorder %v1549, 1
    %vm1569 = vcmp.lt.s32.totalorder %v1549, 2
    %vm1570 = vcmp.lt.s32.totalorder %v1549, 3
    %vm1571 = vcmp.lt.s32.totalorder %v1549, 4
    %v1572 = vsel %vm1568, %v1552, %v1555
    %v1573 = vsel %vm1571, %v1561, 2102212464
    %v1574 = vsel %vm1570, %v1558, %v1573
    %v1575 = vsel %vm1569, %v1572, %v1574
    %v1576 = vsel %vm1568, %v1555, %v1558
    %v1577 = vsel %vm1571, %v1564, 920167782
    %v1578 = vsel %vm1570, %v1561, %v1577
    %v1579 = vsel %vm1569, %v1576, %v1578
    %v1580 = vsel %vm1568, %v1558, %v1561
    %v1581 = vsel %vm1571, %v1567, 1326507024
    %v1582 = vsel %vm1570, %v1564, %v1581
    %v1583 = vsel %vm1569, %v1580, %v1582
    %v1584 = vshll.u32 %v1544, 8
    %v1585 = vmul.u32.u64.compose %v1584, %v1583
    %v1586 = vextract.low.u32 %v1585
    %v1587 = vextract.high.u32 %v1585
    %v1588 = vmul.u32.u64.compose %v1584, %v1579
    %v1589 = vextract.low.u32 %v1588
    %v1590 = vextract.high.u32 %v1588
    %v1591 = vmul.u32 %v1584, %v1575
    %v1592 = vadd.s32 %v1587, %v1589
    %vm1593 = vc.u32 %v1587, %v1589
    %v1594 = vadd.s32 %v1590, 1
    %v1595 = vsel %vm1593, %v1594, %v1590
    %v1596 = vadd.s32 %v1591, %v1595
    %v1597 = vadd.s32 %v1596, 536870912
    %v1598 = vshrl.u32 %v1597, 30
    %v1599 = vshll.u32 %v1598, 30
    %v1600 = vsub.s32 %v1596, %v1599
    %vm1601 = vcmp.lt.s32.totalorder %v1600, 0
    %v1602 = vsub.s32 0, %v1600
    %v1603 = vsel %vm1601, %v1602, %v1600
    %v1604 = vclz %v1603
    %v1605 = vsub.s32 %v1604, 2
    %vm1606 = vcmp.gt.s32.totalorder 0, %v1605
    %v1607 = vsel %vm1606, 0, %v1605
    %v1608 = vsub.s32 32, %v1607
    %v1609 = vshll.u32 %v1600, %v1607
    %v1610 = vshrl.u32 %v1592, %v1608
    %v1611 = vor.u32 %v1609, %v1610
    %v1612 = vsub.s32 4294967266, %v1607
    %v1613 = vadd.s32 %v1612, 127
    %v1614 = vshll.u32 %v1613, 23
    %v1615 = vor.u32 4788187, %v1614
    %v1616 = vand.u32 2147483647, %v1615
    %v1618 = vcvt.s32.f32 %v1611
    %v1619 = vmul.f32 %v1618, %v1616
    %v1620 = vxor.u32 %v1619, 2147483648
    %v1621 = vsel %vm1538, %v1620, %v1619
    %v1622 = vsub.s32 4, %v1598
    %v1623 = vsel %vm1538, %v1622, %v1598
    %v1624 = vsel %vm1537, %v1329, %v1621
    %v1625 = vsel %vm1537, 0, %v1623
    %v1626 = vcosq.f32.pop %v1624
    %v1627 = vsinq.f32.pop %v1624
    %vm1628 = vweird.f32 %v1329
    %v1629 = vand.u32 %v1625, 3
    %vm1630 = vcmp.lt.s32.totalorder %v1629, 2
    %vm1631 = vcmp.eq.s32.totalorder %v1629, 0
    %v1632 = vxor.u32 %v1627, 2147483648
    %v1633 = vsel %vm1631, %v1626, %v1632
    %vm1634 = vcmp.eq.s32.totalorder %v1629, 2
    %v1635 = vxor.u32 %v1626, 2147483648
    %v1636 = vsel %vm1634, %v1635, %v1627
    %v1637 = vsel %vm1630, %v1633, %v1636
    %v1638 = vsel %vm1628, nan, %v1637
    %v1639 = vmul.f32 %v1432, %v667
    %v1640 = vmul.f32 %v1535, %v668
    %v1641 = vmul.f32 %v1638, %v669
    %v1642 = vadd.f32 %v988, %v1639
    %v1643 = vadd.f32 %v989, %v1640
    %v1644 = vadd.f32 %v990, %v1641
    %1645 = vst [vmem:[#allocation2] ss:$4 sm:$0xff] %v1642
    %s1646 = scalar_lea.vmem [#allocation2], 32
    %1647 = vst [vmem:[%s1646] ss:$4 sm:$0xff] %v1643
    %v1648 = vlaneseq
    %vm1649 = vcmp.ge.s32.totalorder %v1648, 0
    %vm1650 = vcmp.lt.s32.totalorder %v1648, 152
    %vm1651 = vmand %vm1649, %vm1650
    %s1652 = scalar_lea.vmem [#allocation2], 64
    %1653 = vst.msk [vmem:[%s1652] ss:$4 sm:$0x3] %vm1651, %v1644
    %v1654 = vand.u32 2147483647, %v1327
    %vm1655 = vcmp.le.f32.partialorder %v1654, 0.7853982
    %vm1656 = vcmp.lt.s32.totalorder %v1327, 0
    %v1657 = vand.u32 %v1327, 2139095040
    %v1658 = vshrl.u32 %v1657, 23
    %v1659 = vsub.s32 %v1658, 127
    %v1660 = vand.u32 2147483647, %v1327
    %v1661 = vand.u32 %v1660, 8388607
    %v1662 = vor.u32 %v1661, 8388608
    %v1663 = vsub.s32 0, %v1662
    %v1664 = vadd.s32 %v1659, 1
    %vm1665 = vcmp.gt.s32.totalorder %v1664, 0
    %v1666 = vsel %vm1665, %v1664, 0
    %v1667 = vshrl.u32 %v1666, 5
    %v1668 = vand.u32 %v1666, 31
    %v1669 = vsub.s32 32, %v1668
    %v1670 = vshrl.u32 683565275, %v1669
    %v1671 = vshll.u32 683565275, %v1668
    %v1672 = vshrl.u32 2475754826, %v1669
    %v1673 = vor.u32 %v1671, %v1672
    %v1674 = vshll.u32 2475754826, %v1668
    %v1675 = vshrl.u32 2131351028, %v1669
    %v1676 = vor.u32 %v1674, %v1675
    %v1677 = vshll.u32 2131351028, %v1668
    %v1678 = vshrl.u32 2102212464, %v1669
    %v1679 = vor.u32 %v1677, %v1678
    %v1680 = vshll.u32 2102212464, %v1668
    %v1681 = vshrl.u32 920167782, %v1669
    %v1682 = vor.u32 %v1680, %v1681
    %v1683 = vshll.u32 920167782, %v1668
    %v1684 = vshrl.u32 1326507024, %v1669
    %v1685 = vor.u32 %v1683, %v1684
    %vm1686 = vcmp.lt.s32.totalorder %v1667, 1
    %vm1687 = vcmp.lt.s32.totalorder %v1667, 2
    %vm1688 = vcmp.lt.s32.totalorder %v1667, 3
    %vm1689 = vcmp.lt.s32.totalorder %v1667, 4
    %v1690 = vsel %vm1686, %v1670, %v1673
    %v1691 = vsel %vm1689, %v1679, 2102212464
    %v1692 = vsel %vm1688, %v1676, %v1691
    %v1693 = vsel %vm1687, %v1690, %v1692
    %v1694 = vsel %vm1686, %v1673, %v1676
    %v1695 = vsel %vm1689, %v1682, 920167782
    %v1696 = vsel %vm1688, %v1679, %v1695
    %v1697 = vsel %vm1687, %v1694, %v1696
    %v1698 = vsel %vm1686, %v1676, %v1679
    %v1699 = vsel %vm1689, %v1685, 1326507024
    %v1700 = vsel %vm1688, %v1682, %v1699
    %v1701 = vsel %vm1687, %v1698, %v1700
    %v1702 = vshll.u32 %v1662, 8
    %v1703 = vmul.u32.u64.compose %v1702, %v1701
    %v1704 = vextract.low.u32 %v1703
    %v1705 = vextract.high.u32 %v1703
    %v1706 = vmul.u32.u64.compose %v1702, %v1697
    %v1707 = vextract.low.u32 %v1706
    %v1708 = vextract.high.u32 %v1706
    %v1709 = vmul.u32 %v1702, %v1693
    %v1710 = vadd.s32 %v1705, %v1707
    %vm1711 = vc.u32 %v1705, %v1707
    %v1712 = vadd.s32 %v1708, 1
    %v1713 = vsel %vm1711, %v1712, %v1708
    %v1714 = vadd.s32 %v1709, %v1713
    %v1715 = vadd.s32 %v1714, 536870912
    %v1716 = vshrl.u32 %v1715, 30
    %v1717 = vshll.u32 %v1716, 30
    %v1718 = vsub.s32 %v1714, %v1717
    %vm1719 = vcmp.lt.s32.totalorder %v1718, 0
    %v1720 = vsub.s32 0, %v1718
    %v1721 = vsel %vm1719, %v1720, %v1718
    %v1722 = vclz %v1721
    %v1723 = vsub.s32 %v1722, 2
    %vm1724 = vcmp.gt.s32.totalorder 0, %v1723
    %v1725 = vsel %vm1724, 0, %v1723
    %v1726 = vsub.s32 32, %v1725
    %v1727 = vshll.u32 %v1718, %v1725
    %v1728 = vshrl.u32 %v1710, %v1726
    %v1729 = vor.u32 %v1727, %v1728
    %v1730 = vsub.s32 4294967266, %v1725
    %v1731 = vadd.s32 %v1730, 127
    %v1732 = vshll.u32 %v1731, 23
    %v1733 = vor.u32 4788187, %v1732
    %v1734 = vand.u32 2147483647, %v1733
    %v1736 = vcvt.s32.f32 %v1729
    %v1737 = vmul.f32 %v1736, %v1734
    %v1738 = vxor.u32 %v1737, 2147483648
    %v1739 = vsel %vm1656, %v1738, %v1737
    %v1740 = vsub.s32 4, %v1716
    %v1741 = vsel %vm1656, %v1740, %v1716
    %v1742 = vsel %vm1655, %v1327, %v1739
    %v1743 = vsel %vm1655, 0, %v1741
    %v1744 = vcosq.f32.pop %v1742
    %v1745 = vsinq.f32.pop %v1742
    %vm1746 = vweird.f32 %v1327
    %v1747 = vadd.s32 %v1743, 3
    %v1748 = vand.u32 %v1747, 3
    %vm1749 = vcmp.lt.s32.totalorder %v1748, 2
    %vm1750 = vcmp.eq.s32.totalorder %v1748, 0
    %v1751 = vxor.u32 %v1745, 2147483648
    %v1752 = vsel %vm1750, %v1744, %v1751
    %vm1753 = vcmp.eq.s32.totalorder %v1748, 2
    %v1754 = vxor.u32 %v1744, 2147483648
    %v1755 = vsel %vm1753, %v1754, %v1745
    %v1756 = vsel %vm1749, %v1752, %v1755
    %v1757 = vsel %vm1746, nan, %v1756
    %v1758 = vand.u32 2147483647, %v1328
    %vm1759 = vcmp.le.f32.partialorder %v1758, 0.7853982
    %vm1760 = vcmp.lt.s32.totalorder %v1328, 0
    %v1761 = vand.u32 %v1328, 2139095040
    %v1762 = vshrl.u32 %v1761, 23
    %v1763 = vsub.s32 %v1762, 127
    %v1764 = vand.u32 2147483647, %v1328
    %v1765 = vand.u32 %v1764, 8388607
    %v1766 = vor.u32 %v1765, 8388608
    %v1767 = vsub.s32 0, %v1766
    %v1768 = vadd.s32 %v1763, 1
    %vm1769 = vcmp.gt.s32.totalorder %v1768, 0
    %v1770 = vsel %vm1769, %v1768, 0
    %v1771 = vshrl.u32 %v1770, 5
    %v1772 = vand.u32 %v1770, 31
    %v1773 = vsub.s32 32, %v1772
    %v1774 = vshrl.u32 683565275, %v1773
    %v1775 = vshll.u32 683565275, %v1772
    %v1776 = vshrl.u32 2475754826, %v1773
    %v1777 = vor.u32 %v1775, %v1776
    %v1778 = vshll.u32 2475754826, %v1772
    %v1779 = vshrl.u32 2131351028, %v1773
    %v1780 = vor.u32 %v1778, %v1779
    %v1781 = vshll.u32 2131351028, %v1772
    %v1782 = vshrl.u32 2102212464, %v1773
    %v1783 = vor.u32 %v1781, %v1782
    %v1784 = vshll.u32 2102212464, %v1772
    %v1785 = vshrl.u32 920167782, %v1773
    %v1786 = vor.u32 %v1784, %v1785
    %v1787 = vshll.u32 920167782, %v1772
    %v1788 = vshrl.u32 1326507024, %v1773
    %v1789 = vor.u32 %v1787, %v1788
    %vm1790 = vcmp.lt.s32.totalorder %v1771, 1
    %vm1791 = vcmp.lt.s32.totalorder %v1771, 2
    %vm1792 = vcmp.lt.s32.totalorder %v1771, 3
    %vm1793 = vcmp.lt.s32.totalorder %v1771, 4
    %v1794 = vsel %vm1790, %v1774, %v1777
    %v1795 = vsel %vm1793, %v1783, 2102212464
    %v1796 = vsel %vm1792, %v1780, %v1795
    %v1797 = vsel %vm1791, %v1794, %v1796
    %v1798 = vsel %vm1790, %v1777, %v1780
    %v1799 = vsel %vm1793, %v1786, 920167782
    %v1800 = vsel %vm1792, %v1783, %v1799
    %v1801 = vsel %vm1791, %v1798, %v1800
    %v1802 = vsel %vm1790, %v1780, %v1783
    %v1803 = vsel %vm1793, %v1789, 1326507024
    %v1804 = vsel %vm1792, %v1786, %v1803
    %v1805 = vsel %vm1791, %v1802, %v1804
    %v1806 = vshll.u32 %v1766, 8
    %v1807 = vmul.u32.u64.compose %v1806, %v1805
    %v1808 = vextract.low.u32 %v1807
    %v1809 = vextract.high.u32 %v1807
    %v1810 = vmul.u32.u64.compose %v1806, %v1801
    %v1811 = vextract.low.u32 %v1810
    %v1812 = vextract.high.u32 %v1810
    %v1813 = vmul.u32 %v1806, %v1797
    %v1814 = vadd.s32 %v1809, %v1811
    %vm1815 = vc.u32 %v1809, %v1811
    %v1816 = vadd.s32 %v1812, 1
    %v1817 = vsel %vm1815, %v1816, %v1812
    %v1818 = vadd.s32 %v1813, %v1817
    %v1819 = vadd.s32 %v1818, 536870912
    %v1820 = vshrl.u32 %v1819, 30
    %v1821 = vshll.u32 %v1820, 30
    %v1822 = vsub.s32 %v1818, %v1821
    %vm1823 = vcmp.lt.s32.totalorder %v1822, 0
    %v1824 = vsub.s32 0, %v1822
    %v1825 = vsel %vm1823, %v1824, %v1822
    %v1826 = vclz %v1825
    %v1827 = vsub.s32 %v1826, 2
    %vm1828 = vcmp.gt.s32.totalorder 0, %v1827
    %v1829 = vsel %vm1828, 0, %v1827
    %v1830 = vsub.s32 32, %v1829
    %v1831 = vshll.u32 %v1822, %v1829
    %v1832 = vshrl.u32 %v1814, %v1830
    %v1833 = vor.u32 %v1831, %v1832
    %v1834 = vsub.s32 4294967266, %v1829
    %v1835 = vadd.s32 %v1834, 127
    %v1836 = vshll.u32 %v1835, 23
    %v1837 = vor.u32 4788187, %v1836
    %v1838 = vand.u32 2147483647, %v1837
    %v1840 = vcvt.s32.f32 %v1833
    %v1841 = vmul.f32 %v1840, %v1838
    %v1842 = vxor.u32 %v1841, 2147483648
    %v1843 = vsel %vm1760, %v1842, %v1841
    %v1844 = vsub.s32 4, %v1820
    %v1845 = vsel %vm1760, %v1844, %v1820
    %v1846 = vsel %vm1759, %v1328, %v1843
    %v1847 = vsel %vm1759, 0, %v1845
    %v1848 = vcosq.f32.pop %v1846
    %v1849 = vsinq.f32.pop %v1846
    %vm1850 = vweird.f32 %v1328
    %v1851 = vadd.s32 %v1847, 3
    %v1852 = vand.u32 %v1851, 3
    %vm1853 = vcmp.lt.s32.totalorder %v1852, 2
    %vm1854 = vcmp.eq.s32.totalorder %v1852, 0
    %v1855 = vxor.u32 %v1849, 2147483648
    %v1856 = vsel %vm1854, %v1848, %v1855
    %vm1857 = vcmp.eq.s32.totalorder %v1852, 2
    %v1858 = vxor.u32 %v1848, 2147483648
    %v1859 = vsel %vm1857, %v1858, %v1849
    %v1860 = vsel %vm1853, %v1856, %v1859
    %v1861 = vsel %vm1850, nan, %v1860
    %v1862 = vand.u32 2147483647, %v1329
    %vm1863 = vcmp.le.f32.partialorder %v1862, 0.7853982
    %vm1864 = vcmp.lt.s32.totalorder %v1329, 0
    %v1865 = vand.u32 %v1329, 2139095040
    %v1866 = vshrl.u32 %v1865, 23
    %v1867 = vsub.s32 %v1866, 127
    %v1868 = vand.u32 2147483647, %v1329
    %v1869 = vand.u32 %v1868, 8388607
    %v1870 = vor.u32 %v1869, 8388608
    %v1871 = vsub.s32 0, %v1870
    %v1872 = vadd.s32 %v1867, 1
    %vm1873 = vcmp.gt.s32.totalorder %v1872, 0
    %v1874 = vsel %vm1873, %v1872, 0
    %v1875 = vshrl.u32 %v1874, 5
    %v1876 = vand.u32 %v1874, 31
    %v1877 = vsub.s32 32, %v1876
    %v1878 = vshrl.u32 683565275, %v1877
    %v1879 = vshll.u32 683565275, %v1876
    %v1880 = vshrl.u32 2475754826, %v1877
    %v1881 = vor.u32 %v1879, %v1880
    %v1882 = vshll.u32 2475754826, %v1876
    %v1883 = vshrl.u32 2131351028, %v1877
    %v1884 = vor.u32 %v1882, %v1883
    %v1885 = vshll.u32 2131351028, %v1876
    %v1886 = vshrl.u32 2102212464, %v1877
    %v1887 = vor.u32 %v1885, %v1886
    %v1888 = vshll.u32 2102212464, %v1876
    %v1889 = vshrl.u32 920167782, %v1877
    %v1890 = vor.u32 %v1888, %v1889
    %v1891 = vshll.u32 920167782, %v1876
    %v1892 = vshrl.u32 1326507024, %v1877
    %v1893 = vor.u32 %v1891, %v1892
    %vm1894 = vcmp.lt.s32.totalorder %v1875, 1
    %vm1895 = vcmp.lt.s32.totalorder %v1875, 2
    %vm1896 = vcmp.lt.s32.totalorder %v1875, 3
    %vm1897 = vcmp.lt.s32.totalorder %v1875, 4
    %v1898 = vsel %vm1894, %v1878, %v1881
    %v1899 = vsel %vm1897, %v1887, 2102212464
    %v1900 = vsel %vm1896, %v1884, %v1899
    %v1901 = vsel %vm1895, %v1898, %v1900
    %v1902 = vsel %vm1894, %v1881, %v1884
    %v1903 = vsel %vm1897, %v1890, 920167782
    %v1904 = vsel %vm1896, %v1887, %v1903
    %v1905 = vsel %vm1895, %v1902, %v1904
    %v1906 = vsel %vm1894, %v1884, %v1887
    %v1907 = vsel %vm1897, %v1893, 1326507024
    %v1908 = vsel %vm1896, %v1890, %v1907
    %v1909 = vsel %vm1895, %v1906, %v1908
    %v1910 = vshll.u32 %v1870, 8
    %v1911 = vmul.u32.u64.compose %v1910, %v1909
    %v1912 = vextract.low.u32 %v1911
    %v1913 = vextract.high.u32 %v1911
    %v1914 = vmul.u32.u64.compose %v1910, %v1905
    %v1915 = vextract.low.u32 %v1914
    %v1916 = vextract.high.u32 %v1914
    %v1917 = vmul.u32 %v1910, %v1901
    %v1918 = vadd.s32 %v1913, %v1915
    %vm1919 = vc.u32 %v1913, %v1915
    %v1920 = vadd.s32 %v1916, 1
    %v1921 = vsel %vm1919, %v1920, %v1916
    %v1922 = vadd.s32 %v1917, %v1921
    %v1923 = vadd.s32 %v1922, 536870912
    %v1924 = vshrl.u32 %v1923, 30
    %v1925 = vshll.u32 %v1924, 30
    %v1926 = vsub.s32 %v1922, %v1925
    %vm1927 = vcmp.lt.s32.totalorder %v1926, 0
    %v1928 = vsub.s32 0, %v1926
    %v1929 = vsel %vm1927, %v1928, %v1926
    %v1930 = vclz %v1929
    %v1931 = vsub.s32 %v1930, 2
    %vm1932 = vcmp.gt.s32.totalorder 0, %v1931
    %v1933 = vsel %vm1932, 0, %v1931
    %v1934 = vsub.s32 32, %v1933
    %v1935 = vshll.u32 %v1926, %v1933
    %v1936 = vshrl.u32 %v1918, %v1934
    %v1937 = vor.u32 %v1935, %v1936
    %v1938 = vsub.s32 4294967266, %v1933
    %v1939 = vadd.s32 %v1938, 127
    %v1940 = vshll.u32 %v1939, 23
    %v1941 = vor.u32 4788187, %v1940
    %v1942 = vand.u32 2147483647, %v1941
    %v1944 = vcvt.s32.f32 %v1937
    %v1945 = vmul.f32 %v1944, %v1942
    %v1946 = vxor.u32 %v1945, 2147483648
    %v1947 = vsel %vm1864, %v1946, %v1945
    %v1948 = vsub.s32 4, %v1924
    %v1949 = vsel %vm1864, %v1948, %v1924
    %v1950 = vsel %vm1863, %v1329, %v1947
    %v1951 = vsel %vm1863, 0, %v1949
    %v1952 = vcosq.f32.pop %v1950
    %v1953 = vsinq.f32.pop %v1950
    %vm1954 = vweird.f32 %v1329
    %v1955 = vadd.s32 %v1951, 3
    %v1956 = vand.u32 %v1955, 3
    %vm1957 = vcmp.lt.s32.totalorder %v1956, 2
    %vm1958 = vcmp.eq.s32.totalorder %v1956, 0
    %v1959 = vxor.u32 %v1953, 2147483648
    %v1960 = vsel %vm1958, %v1952, %v1959
    %vm1961 = vcmp.eq.s32.totalorder %v1956, 2
    %v1962 = vxor.u32 %v1952, 2147483648
    %v1963 = vsel %vm1961, %v1962, %v1953
    %v1964 = vsel %vm1957, %v1960, %v1963
    %v1965 = vsel %vm1954, nan, %v1964
    %v1966 = vmul.f32 %v1757, %v667
    %v1967 = vmul.f32 %v1861, %v668
    %v1968 = vmul.f32 %v1965, %v669
    %v1969 = vadd.f32 %v1306, %v1966
    %v1970 = vadd.f32 %v1307, %v1967
    %v1971 = vadd.f32 %v1308, %v1968
    %s1972 = scalar_lea.vmem [#allocation2], 1
    %1973 = vst [vmem:[%s1972] ss:$4 sm:$0xff] %v1969
    %s1974 = scalar_lea.vmem [#allocation2], 33
    %1975 = vst [vmem:[%s1974] ss:$4 sm:$0xff] %v1970
    %s1976 = scalar_lea.vmem [#allocation2], 65
    %1977 = vst.msk [vmem:[%s1976] ss:$4 sm:$0x3] %vm1651, %v1971
    %v1978 = vadd.f32 %v1327, %v673
    %v1979 = vadd.f32 %v1328, %v674
    %v1980 = vadd.f32 %v1329, %v675
    %v1981 = vadd.f32 %v1978, 3.1415927
    %v1982 = vadd.f32 %v1979, 3.1415927
    %v1983 = vadd.f32 %v1980, 3.1415927
    %v1984 = vmul.f32 %v1981, 0.15915494
    %v1985 = vmul.f32 %v1982, 0.15915494
    %v1986 = vmul.f32 %v1983, 0.15915494
    %v1987 = vfloor.f32 %v1984
    %v1988 = vfloor.f32 %v1985
    %v1989 = vfloor.f32 %v1986
    %v1990 = vmul.f32 %v1987, 6.2831855
    %v1991 = vmul.f32 %v1988, 6.2831855
    %v1992 = vmul.f32 %v1989, 6.2831855
    %v1993 = vsub.f32 %v1981, %v1990
    %v1994 = vsub.f32 %v1982, %v1991
    %v1995 = vsub.f32 %v1983, %v1992
    %v1996 = vsub.f32 %v1993, 3.1415927
    %v1997 = vsub.f32 %v1994, 3.1415927
    %v1998 = vsub.f32 %v1995, 3.1415927
    %s1999 = scalar_lea.vmem [#allocation2], 2
    %2000 = vst [vmem:[%s1999] ss:$4 sm:$0xff] %v1996
    %s2001 = scalar_lea.vmem [#allocation2], 34
    %2002 = vst [vmem:[%s2001] ss:$4 sm:$0xff] %v1997
    %s2003 = scalar_lea.vmem [#allocation2], 66
    %2004 = vst.msk [vmem:[%s2003] ss:$4 sm:$0x3] %vm1651, %v1998
    %2005 = vst [vmem:[%s4] sm:$0xff] %v1327
    %2006 = vst [vmem:[%s4 + $0x8] sm:$0xff] %v1328
    %2007 = vst.msk [vmem:[%s4 + $0x10] sm:$0x3] %vm1651, %v1329
    // Predicated region
    $region14: #{motion_model.1} parent=1 // pred_check
      _
    $region15: #{motion_model.1} parent=1 // pred_check_branch
      %2009 = sbr.rel (0) target = $region17
    $region16: #{motion_model.1} parent=1 // pred_region
      %s2011 = ssub.s32 1152, 1152
      %2012 = vsyncadd [#allocation3], %s2011
      %s2014 = sshll.u32 [#allocation2], 4
      %s2015 = int_to_ptr.vmem [resolvable:$true] %s2014
      %2017 = dma.vmem_to_hbm [thread:$0]  %s2015, 1152, %s3, [#allocation3]
    $region17: #{motion_model.1} parent=1 // pred_fallthru
      _
    // Predicated region
    $region18: #{motion_model.1} parent=1 // pred_check
      _
    $region19: #{motion_model.1} parent=1 // pred_check_branch
      %2019 = sbr.rel (0) target = $region21
    $region20: #{motion_model.1} parent=1 // pred_region
      _
    $region21: #{motion_model.1} parent=1 // pred_fallthru
      _
    // Predicated region
    $region22: #{motion_model.1} parent=1 // pred_check
      _
    $region23: #{motion_model.1} parent=1 // pred_check_branch
      %2021 = sbr.rel (0) target = $region25
    $region24: #{motion_model.1} parent=1 // pred_region
      %2022 = dma.done [#allocation3], 1152
    $region25: #{motion_model.1} parent=1 // pred_fallthru
      _
    // Predicated region
    $region26: #{motion_model.1} parent=1 // pred_check
      _
    $region27: #{motion_model.1} parent=1 // pred_check_branch
      %2024 = sbr.rel (0) target = $region29
    $region28: #{motion_model.1} parent=1 // pred_region
      _
    $region29: #{motion_model.1} parent=1 // pred_fallthru
      _
    %2025 = vsyncpa [#allocation3], 1

</llo_original>
